<compile_context>
chip_gen: v7x
topology: tpu7x:2x2x1
jax: 0.10.0
libtpu: 0.0.40
codegen_flags: <defaults>
</compile_context>

<pallas_src>
import functools

import jax
import jax.numpy as jnp
from jax.experimental import pallas as pl
from jax.experimental.pallas import tpu as pltpu

LRELU_SLOPE = 0.1
BN_EPS = 1e-5
LANE = 128
SUBLANE = 8


def _round_up(x, m):
    return (x + m - 1) // m * m


def _vmem_capacity_bytes():
    """Physical VMEM per core (generation-aware); conservative fallback."""
    try:
        info = pltpu.get_tpu_info()
        for attr in ("vmem_capacity_bytes", "vmem_bytes"):
            v = getattr(info, attr, None)
            if v:
                return int(v)
    except Exception:
        pass
    return 64 << 20          # v7x per-core size: safe lower bound


_VMEM_CAP = _vmem_capacity_bytes()


# ------------------------------------------------------------------ kernels --

def _stats_epilogue(acc_ref, conv_ref, psum_ref, psumsq_ref):
    """Stream the f32 accumulator in chunks: store the bf16 conv tile and emit
    per-channel partial sum / sum-of-squares (bounded vreg pressure)."""
    tm, n_pad = acc_ref.shape
    ch = 64 if tm % 64 == 0 else SUBLANE        # tm is always a multiple of 8
    s = jnp.zeros((SUBLANE, n_pad), jnp.float32)
    ss = jnp.zeros((SUBLANE, n_pad), jnp.float32)
    for c in range(tm // ch):
        blk = acc_ref[c * ch:(c + 1) * ch, :]                  # (ch, n_pad) f32
        conv_ref[c * ch:(c + 1) * ch, :] = blk.astype(conv_ref.dtype)
        g = blk.reshape(ch // SUBLANE, SUBLANE, n_pad)         # VPU-only adds
        s = s + jnp.sum(g, axis=0)
        ss = ss + jnp.sum(g * g, axis=0)
    psum_ref[...] = s[None]                                    # (1, 8, n_pad)
    psumsq_ref[...] = ss[None]


def _conv_stats_kernel(a_ref, b_ref, conv_ref, psum_ref, psumsq_ref, acc_ref,
                       *, multi_k):
    """im2col matmul (bf16 operands, f32 acc) with fused per-channel batch-stat
    partials.  multi_k=False: K fits in one resident B block (no K grid)."""
    if multi_k:
        k = pl.program_id(1)

        @pl.when(k == 0)
        def _():
            acc_ref[...] = jnp.zeros_like(acc_ref)

        acc_ref[...] += jnp.dot(a_ref[...], b_ref[...],
                                preferred_element_type=jnp.float32)

        @pl.when(k == pl.num_programs(1) - 1)
        def _():
            _stats_epilogue(acc_ref, conv_ref, psum_ref, psumsq_ref)
    else:
        acc_ref[...] = jnp.dot(a_ref[...], b_ref[...],
                               preferred_element_type=jnp.float32)
        _stats_epilogue(acc_ref, conv_ref, psum_ref, psumsq_ref)


def _conv_bias_kernel(a_ref, b_ref, bias_ref, conv_ref, acc_ref, *, multi_k):
    """bn_act=False path: conv + bias only (f32 output)."""
    if multi_k:
        k = pl.program_id(1)

        @pl.when(k == 0)
        def _():
            acc_ref[...] = jnp.zeros_like(acc_ref)

        acc_ref[...] += jnp.dot(a_ref[...], b_ref[...],
                                preferred_element_type=jnp.float32)

        @pl.when(k == pl.num_programs(1) - 1)
        def _():
            conv_ref[...] = (acc_ref[...] + bias_ref[...]).astype(conv_ref.dtype)
    else:
        acc_ref[...] = jnp.dot(a_ref[...], b_ref[...],
                               preferred_element_type=jnp.float32)
        conv_ref[...] = (acc_ref[...] + bias_ref[...]).astype(conv_ref.dtype)


def _bn_lrelu_kernel(x_ref, scale_ref, shift_ref, o_ref):
    # Affine BatchNorm apply + LeakyReLU(0.1): bf16 in, f32 math, bf16 out
    # (written in place over the conv buffer via input_output_aliases).
    y = x_ref[...].astype(jnp.float32) * scale_ref[...] + shift_ref[...]
    o_ref[...] = jnp.where(y >= 0, y, LRELU_SLOPE * y).astype(o_ref.dtype)


# ------------------------------------------------------------------ helpers --

def _im2col(x_nchw, kh, kw, stride, padding):
    """bf16 patch matrix [N*Ho*Wo, C*KH*KW] (K index = c*KH*KW + i*KW + j)."""
    n, c, h, w = x_nchw.shape
    xp = jnp.pad(x_nchw, ((0, 0), (0, 0), (padding, padding), (padding, padding)))
    h_out = (h + 2 * padding - kh) // stride + 1
    w_out = (w + 2 * padding - kw) // stride + 1
    cols = []
    for i in range(kh):
        for j in range(kw):
            cols.append(xp[:, :, i:i + stride * h_out:stride,
                              j:j + stride * w_out:stride])    # [N, C, Ho, Wo]
    patches = jnp.stack(cols, axis=2)                # [N, C, KH*KW, Ho, Wo]
    patches = patches.transpose(0, 3, 4, 1, 2)       # [N, Ho, Wo, C, KH*KW]
    return patches.reshape(n * h_out * w_out, c * kh * kw), h_out, w_out


def _conv_vmem_bytes(tm, tk, n_pad, single_k):
    a = 2 * tm * tk * 2                               # A tiles, bf16, 2-buffered
    b = tk * n_pad * 2 * (1 if single_k else 2)       # B: resident or 2-buffered
    conv = 2 * tm * n_pad * 4                         # conv-out blocks, 2-buffered
    acc = tm * n_pad * 4                              # f32 accumulator scratch
    stats = 4 * SUBLANE * n_pad * 4                   # stat partial blocks
    return a + b + conv + acc + stats


def _pick_tiles(m, k_pad, n_pad):
    budget = min(int(_VMEM_CAP * 0.4), 64 << 20)
    # Keep B fully resident (no K grid axis) whenever it is cheap to do so.
    single_k = (k_pad <= 2048) and (k_pad * n_pad * 2 <= budget // 4)
    if single_k:
        tk = k_pad
    else:
        tk = LANE
        for cand in (1024, 512, 256):                 # must evenly divide k_pad
            if k_pad % cand == 0:
                tk = cand
                break
    tm = 256
    for cand in (1024, 512, 256):
        if _conv_vmem_bytes(cand, tk, n_pad, single_k) <= budget:
            tm = cand
            break
    # v7x has 2 TensorCores: keep >= 2 tiles on the "parallel" M axis.
    while tm > 256 and -(-m // tm) < 2:
        tm //= 2
    k_grid = 1 if single_k else k_pad // tk
    return tm, tk, k_grid, single_k, _conv_vmem_bytes(tm, tk, n_pad, single_k)


# ------------------------------------------------------------------ wrapper --

@functools.partial(jax.jit, static_argnames=("stride", "padding", "bn_act"))
def cnn_block_forward(x, weight, conv_bias, gamma, beta, *,
                      stride=1, padding=1, bn_act=True):
    """x: [N, C_in, H, W] (NCHW); weight: [C_out, C_in, KH, KW] (OIHW)."""
    n, c_in, h, w = x.shape
    c_out, c_in_w, kh, kw = weight.shape
    assert c_in == c_in_w

    # bf16 im2col (MXU operand dtype).  TODO(synk): fuse im2col into the conv
    # kernel to remove the KH*KW HBM read amplification of this XLA step.
    a, h_out, w_out = _im2col(x.astype(jnp.bfloat16), kh, kw, stride, padding)
    m, k = a.shape
    n_pad = _round_up(c_out, LANE)
    k_pad = _round_up(k, LANE)
    tm, tk, k_grid, single_k, vmem_est = _pick_tiles(m, k_pad, n_pad)
    m_pad = _round_up(m, tm)
    m_grid = m_pad // tm

    a_p = jnp.pad(a, ((0, m_pad - m), (0, k_pad - k)))
    b = weight.reshape(c_out, c_in * kh * kw).T.astype(jnp.bfloat16)  # [K, C_out]
    b_p = jnp.pad(b, ((0, k_pad - k), (0, n_pad - c_out)))

    vmem_limit = int(min(max(2 * vmem_est, 8 << 20), int(_VMEM_CAP * 0.75)))

    if single_k:
        grid = (m_grid,)
        dims = ("parallel",)
        a_spec = pl.BlockSpec((tm, k_pad), lambda i: (i, 0))
        b_spec = pl.BlockSpec((k_pad, n_pad), lambda i: (0, 0))   # resident
        conv_spec = pl.BlockSpec((tm, n_pad), lambda i: (i, 0))
        stat_spec = pl.BlockSpec((1, SUBLANE, n_pad), lambda i: (i, 0, 0))
        bias_spec = pl.BlockSpec((1, n_pad), lambda i: (0, 0))
    else:
        grid = (m_grid, k_grid)
        dims = ("parallel", "arbitrary")
        a_spec = pl.BlockSpec((tm, tk), lambda i, kk: (i, kk))
        b_spec = pl.BlockSpec((tk, n_pad), lambda i, kk: (kk, 0))
        conv_spec = pl.BlockSpec((tm, n_pad), lambda i, kk: (i, 0))
        stat_spec = pl.BlockSpec((1, SUBLANE, n_pad), lambda i, kk: (i, 0, 0))
        bias_spec = pl.BlockSpec((1, n_pad), lambda i, kk: (0, 0))

    conv_cparams = pltpu.CompilerParams(
        dimension_semantics=dims, vmem_limit_bytes=vmem_limit)

    if bn_act:
        conv_p, psum, psumsq = pl.pallas_call(
            functools.partial(_conv_stats_kernel, multi_k=not single_k),
            out_shape=(jax.ShapeDtypeStruct((m_pad, n_pad), jnp.bfloat16),
                       jax.ShapeDtypeStruct((m_grid, SUBLANE, n_pad), jnp.float32),
                       jax.ShapeDtypeStruct((m_grid, SUBLANE, n_pad), jnp.float32)),
            grid_spec=pltpu.PrefetchScalarGridSpec(
                num_scalar_prefetch=0, grid=grid,
                in_specs=[a_spec, b_spec],
                out_specs=(conv_spec, stat_spec, stat_spec),
                scratch_shapes=[pltpu.VMEM((tm, n_pad), jnp.float32)]),
            compiler_params=conv_cparams,
        )(a_p, b_p)

        # Tiny f32 reduction of per-tile partials (padded rows/channels are
        # zero, so dividing by the true M gives exact biased batch stats).
        sums = jnp.sum(psum, axis=(0, 1))                    # (n_pad,)
        sumsqs = jnp.sum(psumsq, axis=(0, 1))
        mean = sums / m
        var = jnp.maximum(sumsqs / m - mean * mean, 0.0)     # BN training mode
        gamma_p = jnp.pad(gamma.astype(jnp.float32), (0, n_pad - c_out),
                          constant_values=1.0)
        beta_p = jnp.pad(beta.astype(jnp.float32), (0, n_pad - c_out))
        scale = gamma_p * jax.lax.rsqrt(var + BN_EPS)
        shift = beta_p - mean * scale
        scale = scale.reshape(1, n_pad)
        shift = shift.reshape(1, n_pad)

        out_p = pl.pallas_call(
            _bn_lrelu_kernel,
            out_shape=jax.ShapeDtypeStruct((m_pad, n_pad), jnp.bfloat16),
            grid_spec=pltpu.PrefetchScalarGridSpec(
                num_scalar_prefetch=0, grid=(m_grid,),
                in_specs=[pl.BlockSpec((tm, n_pad), lambda i: (i, 0)),
                          pl.BlockSpec((1, n_pad), lambda i: (0, 0)),
                          pl.BlockSpec((1, n_pad), lambda i: (0, 0))],
                out_specs=pl.BlockSpec((tm, n_pad), lambda i: (i, 0))),
            compiler_params=pltpu.CompilerParams(
                dimension_semantics=("parallel",),
                vmem_limit_bytes=vmem_limit),
            input_output_aliases={0: 0},              # write in place over conv_p
        )(conv_p, scale, shift)
    else:
        bias = conv_bias if conv_bias is not None else jnp.zeros((c_out,), jnp.float32)
        bias_p = jnp.pad(bias.astype(jnp.float32), (0, n_pad - c_out)).reshape(1, n_pad)
        out_p = pl.pallas_call(
            functools.partial(_conv_bias_kernel, multi_k=not single_k),
            out_shape=jax.ShapeDtypeStruct((m_pad, n_pad), jnp.float32),
            grid_spec=pltpu.PrefetchScalarGridSpec(
                num_scalar_prefetch=0, grid=grid,
                in_specs=[a_spec, b_spec, bias_spec],
                out_specs=conv_spec,
                scratch_shapes=[pltpu.VMEM((tm, n_pad), jnp.float32)]),
            compiler_params=conv_cparams,
        )(a_p, b_p, bias_p)

    # Slice off M/channel padding, channels-last -> NCHW, cast to f32
    # (fused into one XLA pass under jit).
    out = out_p[:m, :c_out].reshape(n, h_out, w_out, c_out)
    return out.transpose(0, 3, 1, 2).astype(jnp.float32)


# ---------------------------------------------------------------- reference --

def reference_cnn_block(x, weight, gamma, beta, *, stride=1, padding=1):
    y = jax.lax.conv_general_dilated(
        x, weight, (stride, stride),
        [(padding, padding), (padding, padding)],
        dimension_numbers=("NCHW", "OIHW", "NCHW"))
    mean = y.mean(axis=(0, 2, 3), keepdims=True)
    var = y.var(axis=(0, 2, 3), keepdims=True)   # biased, matches BN training mode
    yb = gamma.reshape(1, -1, 1, 1) * (y - mean) / jnp.sqrt(var + BN_EPS) \
        + beta.reshape(1, -1, 1, 1)
    return jnp.where(yb >= 0, yb, LRELU_SLOPE * yb)


# --------------------------------------------------------------------- main --

if __name__ == "__main__":
    key = jax.random.PRNGKey(0)
    k_x, k_w, k_g, k_b = jax.random.split(key, 4)

    # CNNBlock(in_channels=4, out_channels=8, kernel_size=3, stride=1, padding=1)
    N, C_IN, H, W = 2, 4, 16, 16
    C_OUT, KH, KW = 8, 3, 3

    x = jax.random.normal(k_x, (N, C_IN, H, W), jnp.float32)
    weight = jax.random.normal(k_w, (C_OUT, C_IN, KH, KW), jnp.float32) * 0.1
    gamma = 1.0 + 0.1 * jax.random.normal(k_g, (C_OUT,), jnp.float32)
    beta = 0.1 * jax.random.normal(k_b, (C_OUT,), jnp.float32)

    out = cnn_block_forward(x, weight, None, gamma, beta,
                            stride=1, padding=1, bn_act=True)
    out = jax.block_until_ready(out)

    # Kernel uses bf16 MXU operands and a bf16 conv->BN intermediate; compare
    # against an f32 reference run on the same bf16-quantized inputs, with a
    # tolerance loosened to bf16 rounding of the intermediate/output.
    xq = x.astype(jnp.bfloat16).astype(jnp.float32)
    wq = weight.astype(jnp.bfloat16).astype(jnp.float32)
    ref = reference_cnn_block(xq, wq, gamma, beta, stride=1, padding=1)

    assert out.shape == (N, C_OUT, H, W)
    assert jnp.allclose(out, ref, atol=3e-2, rtol=3e-2), \
        f"max err {jnp.max(jnp.abs(out - ref))}"

    print("KERNEL_OK")
</pallas_src>

<mosaic_0001>
module attributes {stable_mosaic.version = 11 : i64} {
  func.func @_conv_stats_kernel(%arg0: i32, %arg1: memref<256x128xbf16, #tpu.memory_space<vmem>>, %arg2: memref<128x128xbf16, #tpu.memory_space<vmem>>, %arg3: memref<256x128xbf16, #tpu.memory_space<vmem>>, %arg4: memref<1x8x128xf32, #tpu.memory_space<vmem>>, %arg5: memref<1x8x128xf32, #tpu.memory_space<vmem>>, %arg6: memref<256x128xf32, #tpu.memory_space<vmem>>) attributes {dimension_semantics = [#tpu.dimension_semantics<parallel>], iteration_bounds = array<i64: 2>, scalar_prefetch = 0 : i64, scratch_operands = 1 : i64, tpu.core_type = #tpu.core_type<tc>, window_params = [{transform_indices = @transform_0, window_bounds = array<i64: 256, 128>}, {pipeline_mode = #tpu.pipeline_mode<synchronous>, transform_indices = @transform_1, window_bounds = array<i64: 128, 128>}, {transform_indices = @transform_2, window_bounds = array<i64: 256, 128>}, {transform_indices = @transform_3, window_bounds = array<i64: 1, 8, 128>}, {transform_indices = @transform_4, window_bounds = array<i64: 1, 8, 128>}]} {
    %c0 = arith.constant 0 : index
    %c0_0 = arith.constant 0 : index
    %0 = vector.load %arg1[%c0, %c0_0] : memref<256x128xbf16, #tpu.memory_space<vmem>>, vector<256x128xbf16>
    %c0_1 = arith.constant 0 : index
    %c0_2 = arith.constant 0 : index
    %1 = vector.load %arg2[%c0_1, %c0_2] : memref<128x128xbf16, #tpu.memory_space<vmem>>, vector<128x128xbf16>
    %cst = arith.constant dense<0.000000e+00> : vector<256x128xf32>
    %2 = tpu.matmul %0, %1, %cst {dimension_numbers = #tpu.dot_dimension_numbers<[1], [0], [0], [1], [0, 0, 1, 1], [], []>} : vector<256x128xbf16>, vector<128x128xbf16>, vector<256x128xf32> -> vector<256x128xf32>
    %c0_3 = arith.constant 0 : index
    %c0_4 = arith.constant 0 : index
    %3 = vector.load %arg6[%c0_3, %c0_4] : memref<256x128xf32, #tpu.memory_space<vmem>>, vector<256x128xf32>
    tpu.vector_store %arg6[%c0_3, %c0_4], %2 {strides = array<i32>} : memref<256x128xf32, #tpu.memory_space<vmem>>, vector<256x128xf32>,
    %cst_5 = arith.constant 0.000000e+00 : f32
    %4 = vector.broadcast %cst_5 : f32 to vector<8x128xf32>
    %cst_6 = arith.constant 0.000000e+00 : f32
    %5 = vector.broadcast %cst_6 : f32 to vector<8x128xf32>
    %c0_7 = arith.constant 0 : index
    %c0_8 = arith.constant 0 : index
    %6 = vector.load %arg6[%c0_7, %c0_8] : memref<256x128xf32, #tpu.memory_space<vmem>>, vector<64x128xf32>
    %7 = arith.truncf %6 : vector<64x128xf32> to vector<64x128xbf16>
    %c0_9 = arith.constant 0 : index
    %c0_10 = arith.constant 0 : index
    %8 = vector.load %arg3[%c0_9, %c0_10] : memref<256x128xbf16, #tpu.memory_space<vmem>>, vector<64x128xbf16>
    tpu.vector_store %arg3[%c0_9, %c0_10], %7 {strides = array<i32>} : memref<256x128xbf16, #tpu.memory_space<vmem>>, vector<64x128xbf16>,
    %9 = vector.shape_cast %6 : vector<64x128xf32> to vector<8x8x128xf32>
    %cst_11 = arith.constant dense<0.000000e+00> : vector<8x128xf32>
    %10 = vector.multi_reduction <add>, %9, %cst_11 [0] : vector<8x8x128xf32> to vector<8x128xf32>
    %11 = arith.addf %4, %10 : vector<8x128xf32>
    %12 = arith.mulf %9, %9 : vector<8x8x128xf32>
    %cst_12 = arith.constant dense<0.000000e+00> : vector<8x128xf32>
    %13 = vector.multi_reduction <add>, %12, %cst_12 [0] : vector<8x8x128xf32> to vector<8x128xf32>
    %14 = arith.addf %5, %13 : vector<8x128xf32>
    %c64 = arith.constant 64 : index
    %c0_13 = arith.constant 0 : index
    %15 = vector.load %arg6[%c64, %c0_13] : memref<256x128xf32, #tpu.memory_space<vmem>>, vector<64x128xf32>
    %16 = arith.truncf %15 : vector<64x128xf32> to vector<64x128xbf16>
    %c64_14 = arith.constant 64 : index
    %c0_15 = arith.constant 0 : index
    %17 = vector.load %arg3[%c64_14, %c0_15] : memref<256x128xbf16, #tpu.memory_space<vmem>>, vector<64x128xbf16>
    tpu.vector_store %arg3[%c64_14, %c0_15], %16 {strides = array<i32>} : memref<256x128xbf16, #tpu.memory_space<vmem>>, vector<64x128xbf16>,
    %18 = vector.shape_cast %15 : vector<64x128xf32> to vector<8x8x128xf32>
    %cst_16 = arith.constant dense<0.000000e+00> : vector<8x128xf32>
    %19 = vector.multi_reduction <add>, %18, %cst_16 [0] : vector<8x8x128xf32> to vector<8x128xf32>
    %20 = arith.addf %11, %19 : vector<8x128xf32>
    %21 = arith.mulf %18, %18 : vector<8x8x128xf32>
    %cst_17 = arith.constant dense<0.000000e+00> : vector<8x128xf32>
    %22 = vector.multi_reduction <add>, %21, %cst_17 [0] : vector<8x8x128xf32> to vector<8x128xf32>
    %23 = arith.addf %14, %22 : vector<8x128xf32>
    %c128 = arith.constant 128 : index
    %c0_18 = arith.constant 0 : index
    %24 = vector.load %arg6[%c128, %c0_18] : memref<256x128xf32, #tpu.memory_space<vmem>>, vector<64x128xf32>
    %25 = arith.truncf %24 : vector<64x128xf32> to vector<64x128xbf16>
    %c128_19 = arith.constant 128 : index
    %c0_20 = arith.constant 0 : index
    %26 = vector.load %arg3[%c128_19, %c0_20] : memref<256x128xbf16, #tpu.memory_space<vmem>>, vector<64x128xbf16>
    tpu.vector_store %arg3[%c128_19, %c0_20], %25 {strides = array<i32>} : memref<256x128xbf16, #tpu.memory_space<vmem>>, vector<64x128xbf16>,
    %27 = vector.shape_cast %24 : vector<64x128xf32> to vector<8x8x128xf32>
    %cst_21 = arith.constant dense<0.000000e+00> : vector<8x128xf32>
    %28 = vector.multi_reduction <add>, %27, %cst_21 [0] : vector<8x8x128xf32> to vector<8x128xf32>
    %29 = arith.addf %20, %28 : vector<8x128xf32>
    %30 = arith.mulf %27, %27 : vector<8x8x128xf32>
    %cst_22 = arith.constant dense<0.000000e+00> : vector<8x128xf32>
    %31 = vector.multi_reduction <add>, %30, %cst_22 [0] : vector<8x8x128xf32> to vector<8x128xf32>
    %32 = arith.addf %23, %31 : vector<8x128xf32>
    %c192 = arith.constant 192 : index
    %c0_23 = arith.constant 0 : index
    %33 = vector.load %arg6[%c192, %c0_23] : memref<256x128xf32, #tpu.memory_space<vmem>>, vector<64x128xf32>
    %34 = arith.truncf %33 : vector<64x128xf32> to vector<64x128xbf16>
    %c192_24 = arith.constant 192 : index
    %c0_25 = arith.constant 0 : index
    %35 = vector.load %arg3[%c192_24, %c0_25] : memref<256x128xbf16, #tpu.memory_space<vmem>>, vector<64x128xbf16>
    tpu.vector_store %arg3[%c192_24, %c0_25], %34 {strides = array<i32>} : memref<256x128xbf16, #tpu.memory_space<vmem>>, vector<64x128xbf16>,
    %36 = vector.shape_cast %33 : vector<64x128xf32> to vector<8x8x128xf32>
    %cst_26 = arith.constant dense<0.000000e+00> : vector<8x128xf32>
    %37 = vector.multi_reduction <add>, %36, %cst_26 [0] : vector<8x8x128xf32> to vector<8x128xf32>
    %38 = arith.addf %29, %37 : vector<8x128xf32>
    %39 = arith.mulf %36, %36 : vector<8x8x128xf32>
    %cst_27 = arith.constant dense<0.000000e+00> : vector<8x128xf32>
    %40 = vector.multi_reduction <add>, %39, %cst_27 [0] : vector<8x8x128xf32> to vector<8x128xf32>
    %41 = arith.addf %32, %40 : vector<8x128xf32>
    %42 = vector.shape_cast %38 : vector<8x128xf32> to vector<1x8x128xf32>
    %c0_28 = arith.constant 0 : index
    %c0_29 = arith.constant 0 : index
    %c0_30 = arith.constant 0 : index
    %43 = vector.load %arg4[%c0_28, %c0_29, %c0_30] : memref<1x8x128xf32, #tpu.memory_space<vmem>>, vector<1x8x128xf32>
    tpu.vector_store %arg4[%c0_28, %c0_29, %c0_30], %42 {strides = array<i32>} : memref<1x8x128xf32, #tpu.memory_space<vmem>>, vector<1x8x128xf32>,
    %44 = vector.shape_cast %41 : vector<8x128xf32> to vector<1x8x128xf32>
    %c0_31 = arith.constant 0 : index
    %c0_32 = arith.constant 0 : index
    %c0_33 = arith.constant 0 : index
    %45 = vector.load %arg5[%c0_31, %c0_32, %c0_33] : memref<1x8x128xf32, #tpu.memory_space<vmem>>, vector<1x8x128xf32>
    tpu.vector_store %arg5[%c0_31, %c0_32, %c0_33], %44 {strides = array<i32>} : memref<1x8x128xf32, #tpu.memory_space<vmem>>, vector<1x8x128xf32>,
    return
  }
  func.func @transform_0(%arg0: i32) -> (i32, i32) {
    %c0_i32 = arith.constant 0 : i32
    %c0_i32_0 = arith.constant 0 : i32
    return %arg0, %c0_i32 : i32, i32
  }
  func.func @transform_1(%arg0: i32) -> (i32, i32) {
    %c0_i32 = arith.constant 0 : i32
    %c0_i32_0 = arith.constant 0 : i32
    %c0_i32_1 = arith.constant 0 : i32
    return %c0_i32, %c0_i32_0 : i32, i32
  }
  func.func @transform_2(%arg0: i32) -> (i32, i32) {
    %c0_i32 = arith.constant 0 : i32
    %c0_i32_0 = arith.constant 0 : i32
    return %arg0, %c0_i32 : i32, i32
  }
  func.func @transform_3(%arg0: i32) -> (i32, i32, i32) {
    %c0_i32 = arith.constant 0 : i32
    %c0_i32_0 = arith.constant 0 : i32
    %c0_i32_1 = arith.constant 0 : i32
    return %arg0, %c0_i32, %c0_i32_0 : i32, i32, i32
  }
  func.func @transform_4(%arg0: i32) -> (i32, i32, i32) {
    %c0_i32 = arith.constant 0 : i32
    %c0_i32_0 = arith.constant 0 : i32
    %c0_i32_1 = arith.constant 0 : i32
    return %arg0, %c0_i32, %c0_i32_0 : i32, i32, i32
  }
}

module attributes {stable_mosaic.version = 11 : i64} {
  func.func @_bn_lrelu_kernel(%arg0: i32, %arg1: memref<256x128xbf16, #tpu.memory_space<vmem>>, %arg2: memref<1x128xf32, #tpu.memory_space<vmem>>, %arg3: memref<1x128xf32, #tpu.memory_space<vmem>>, %arg4: memref<256x128xbf16, #tpu.memory_space<vmem>>) attributes {dimension_semantics = [#tpu.dimension_semantics<parallel>], iteration_bounds = array<i64: 2>, scalar_prefetch = 0 : i64, scratch_operands = 0 : i64, tpu.core_type = #tpu.core_type<tc>, window_params = [{transform_indices = @transform_0, window_bounds = array<i64: 256, 128>}, {pipeline_mode = #tpu.pipeline_mode<synchronous>, transform_indices = @transform_1, window_bounds = array<i64: 1, 128>}, {pipeline_mode = #tpu.pipeline_mode<synchronous>, transform_indices = @transform_2, window_bounds = array<i64: 1, 128>}, {transform_indices = @transform_3, window_bounds = array<i64: 256, 128>}]} {
    %c0 = arith.constant 0 : index
    %c0_0 = arith.constant 0 : index
    %0 = vector.load %arg1[%c0, %c0_0] : memref<256x128xbf16, #tpu.memory_space<vmem>>, vector<256x128xbf16>
    %1 = arith.extf %0 : vector<256x128xbf16> to vector<256x128xf32>
    %c0_1 = arith.constant 0 : index
    %c0_2 = arith.constant 0 : index
    %2 = vector.load %arg2[%c0_1, %c0_2] : memref<1x128xf32, #tpu.memory_space<vmem>>, vector<1x128xf32>
    %3 = vector.broadcast %2 : vector<1x128xf32> to vector<256x128xf32>
    %4 = arith.mulf %1, %3 : vector<256x128xf32>
    %c0_3 = arith.constant 0 : index
    %c0_4 = arith.constant 0 : index
    %5 = vector.load %arg3[%c0_3, %c0_4] : memref<1x128xf32, #tpu.memory_space<vmem>>, vector<1x128xf32>
    %6 = vector.broadcast %5 : vector<1x128xf32> to vector<256x128xf32>
    %7 = arith.addf %4, %6 : vector<256x128xf32>
    %cst = arith.constant 0.000000e+00 : f32
    %8 = vector.broadcast %cst : f32 to vector<256x128xf32>
    %9 = arith.cmpf oge, %7, %8 : vector<256x128xf32>
    %cst_5 = arith.constant 1.000000e-01 : f32
    %10 = vector.broadcast %cst_5 : f32 to vector<256x128xf32>
    %11 = arith.mulf %10, %7 : vector<256x128xf32>
    %12 = arith.select %9, %7, %11 : vector<256x128xi1>, vector<256x128xf32>
    %13 = arith.truncf %12 : vector<256x128xf32> to vector<256x128xbf16>
    %c0_6 = arith.constant 0 : index
    %c0_7 = arith.constant 0 : index
    %14 = vector.load %arg4[%c0_6, %c0_7] : memref<256x128xbf16, #tpu.memory_space<vmem>>, vector<256x128xbf16>
    tpu.vector_store %arg4[%c0_6, %c0_7], %13 {strides = array<i32>} : memref<256x128xbf16, #tpu.memory_space<vmem>>, vector<256x128xbf16>,
    return
  }
  func.func @transform_0(%arg0: i32) -> (i32, i32) {
    %c0_i32 = arith.constant 0 : i32
    %c0_i32_0 = arith.constant 0 : i32
    return %arg0, %c0_i32 : i32, i32
  }
  func.func @transform_1(%arg0: i32) -> (i32, i32) {
    %c0_i32 = arith.constant 0 : i32
    %c0_i32_0 = arith.constant 0 : i32
    %c0_i32_1 = arith.constant 0 : i32
    return %c0_i32, %c0_i32_0 : i32, i32
  }
  func.func @transform_2(%arg0: i32) -> (i32, i32) {
    %c0_i32 = arith.constant 0 : i32
    %c0_i32_0 = arith.constant 0 : i32
    %c0_i32_1 = arith.constant 0 : i32
    return %c0_i32, %c0_i32_0 : i32, i32
  }
  func.func @transform_3(%arg0: i32) -> (i32, i32) {
    %c0_i32 = arith.constant 0 : i32
    %c0_i32_0 = arith.constant 0 : i32
    return %arg0, %c0_i32 : i32, i32
  }
}

</mosaic_0001>

<llo_original>
// kernel: cnn_block_forward.3
$region0: #{cnn_block_forward.3}
  #allocation0 [shape = 'u32[]', space=smem, size = 0x4, offset = 0x4, fixed_abs, tag = 'smem constant byte address 0x4 - core index']
  #allocation1 [shape = 'u32[144,128]{1,0:T(1,128)}', space=vmem, size = 0x12000, scoped, tag = 'internal scratch']
  %s0 = inlined_call_operand.vmem [shape: bf16[512,128], index: 0, kind: input, shape index: {}, may-alias: {0,3}]
  %s1 = inlined_call_operand.vmem [shape: f32[1,128], index: 1, kind: input, shape index: {}]
  %s2 = inlined_call_operand.vmem [shape: f32[1,128], index: 2, kind: input, shape index: {}]
  %s3 = inlined_call_operand.vmem [shape: bf16[512,128], index: 3, kind: output, shape index: {}, may-alias: {0,3}]
  %s4 = sld [smem:[#allocation0]]
  $region45: #{cnn_block_forward.3} parent=0
    _
  %s6 = ssub.s32 1, %s4
  %s7 = scalar_select 0, %s6, %s4
  loop: start=0, step=1, limit=4
  $region2: #{cnn_block_forward.3} parent=0 // loop_pre_header
    _
  $region3: #{cnn_block_forward.3} parent=0 // loop_header
    %s9 = sphi 0, %s13
    %p10 = scmp.ge.s32.totalorder %s9, 4
    %s19 = sphi 0, %s21
    %s22 = sphi 0, %s19
    %s23 = sphi 0, %s22
    %s39 = sphi 0, %s23
    %s43 = sphi 0, %s43
    %s45 = sphi 0, %s43
    %s46 = sphi 0, %s45
    %s60 = sphi 0, %s46
    %s64 = sphi 0, %s64
    %s66 = sphi 0, %s64
    %s67 = sphi 0, %s66
    %s81 = sphi 0, %s67
    %s87 = sphi 0, %s89
    %s90 = sphi 0, %s87
    %s91 = sphi 0, %s90
    %s107 = sphi 0, %s91
  $region4: #{cnn_block_forward.3} parent=0 // loop_header_branch
    %12 = sbr.rel (%p10) target = $region8
  $region5: #{cnn_block_forward.3} parent=0 // loop_body
    %s14 = ssub.s32 %s9, 1
    %s15 = ssub.s32 %s9, 2
    %s16 = sadd.s32 %s9, 1
    %s17 = ssub.s32 %s9, %s16
    %p18 = scmp.eq.s32.totalorder %s17, 0
    %s20 = sadd.s32 %s19, 1
    %s21 = scalar_select %p18, %s19, %s20
    %p24 = pneg %p18
    %p25 = scmp.eq.s32.totalorder %s9, 1
    %p26 = por %p24, %p25
    %p27 = scmp.ne.s32.totalorder %s19, %s22
    %p28 = scmp.eq.s32.totalorder %s9, 0
    %p29 = por %p27, %p28
    %p30 = scmp.ne.s32.totalorder %s19, %s22
    %p31 = scmp.eq.s32.totalorder %s14, 1
    %p32 = por %p30, %p31
    %p33 = scmp.ne.s32.totalorder %s22, %s23
    %p34 = scmp.eq.s32.totalorder %s14, 0
    %p35 = por %p33, %p34
    %p36 = scmp.ne.s32.totalorder %s22, %s23
    %p37 = scmp.eq.s32.totalorder %s15, 1
    %p38 = por %p36, %p37
    %p40 = scmp.ne.s32.totalorder %s23, %s39
    %p41 = scmp.eq.s32.totalorder %s15, 0
    %p42 = por %p40, %p41
    %s44 = sadd.s32 %s43, 1
    %p47 = scmp.eq.s32.totalorder %s9, 1
    %p48 = scmp.ne.s32.totalorder %s43, %s45
    %p49 = scmp.eq.s32.totalorder %s9, 0
    %p50 = por %p48, %p49
    %p51 = scmp.ne.s32.totalorder %s43, %s45
    %p52 = scmp.eq.s32.totalorder %s14, 1
    %p53 = por %p51, %p52
    %p54 = scmp.ne.s32.totalorder %s45, %s46
    %p55 = scmp.eq.s32.totalorder %s14, 0
    %p56 = por %p54, %p55
    %p57 = scmp.ne.s32.totalorder %s45, %s46
    %p58 = scmp.eq.s32.totalorder %s15, 1
    %p59 = por %p57, %p58
    %p61 = scmp.ne.s32.totalorder %s46, %s60
    %p62 = scmp.eq.s32.totalorder %s15, 0
    %p63 = por %p61, %p62
    %s65 = sadd.s32 %s64, 1
    %p68 = scmp.eq.s32.totalorder %s9, 1
    %p69 = scmp.ne.s32.totalorder %s64, %s66
    %p70 = scmp.eq.s32.totalorder %s9, 0
    %p71 = por %p69, %p70
    %p72 = scmp.ne.s32.totalorder %s64, %s66
    %p73 = scmp.eq.s32.totalorder %s14, 1
    %p74 = por %p72, %p73
    %p75 = scmp.ne.s32.totalorder %s66, %s67
    %p76 = scmp.eq.s32.totalorder %s14, 0
    %p77 = por %p75, %p76
    %p78 = scmp.ne.s32.totalorder %s66, %s67
    %p79 = scmp.eq.s32.totalorder %s15, 1
    %p80 = por %p78, %p79
    %p82 = scmp.ne.s32.totalorder %s67, %s81
    %p83 = scmp.eq.s32.totalorder %s15, 0
    %p84 = por %p82, %p83
    %s85 = ssub.s32 %s9, %s16
    %p86 = scmp.eq.s32.totalorder %s85, 0
    %s88 = sadd.s32 %s87, 1
    %s89 = scalar_select %p86, %s87, %s88
    %p92 = pneg %p86
    %p93 = scmp.eq.s32.totalorder %s9, 1
    %p94 = por %p92, %p93
    %p95 = scmp.ne.s32.totalorder %s87, %s90
    %p96 = scmp.eq.s32.totalorder %s9, 0
    %p97 = por %p95, %p96
    %p98 = scmp.ne.s32.totalorder %s87, %s90
    %p99 = scmp.eq.s32.totalorder %s14, 1
    %p100 = por %p98, %p99
    %p101 = scmp.ne.s32.totalorder %s90, %s91
    %p102 = scmp.eq.s32.totalorder %s14, 0
    %p103 = por %p101, %p102
    %p104 = scmp.ne.s32.totalorder %s90, %s91
    %p105 = scmp.eq.s32.totalorder %s15, 1
    %p106 = por %p104, %p105
    %p108 = scmp.ne.s32.totalorder %s91, %s107
    %p109 = scmp.eq.s32.totalorder %s15, 0
    %p110 = por %p108, %p109
    %p111 = scmp.le.s32.totalorder 1, %s9
    %p112 = scmp.lt.s32.totalorder %s9, 3
    %p113 = pnand %p111, %p112
    %p114 = pneg %p113
    // Predicated region
    $region9: #{cnn_block_forward.3} parent=5 // pred_check
      _
    $region10: #{cnn_block_forward.3} parent=5 // pred_check_branch
      %116 = sbr.rel (%p113) target = $region12
    $region11: #{cnn_block_forward.3} parent=5 // pred_region
      %s117 = ssub.s32 %s9, 1
      // Predicated region
      $region13: #{cnn_block_forward.3} parent=11 // pred_check
        %p118 = pneg %p56
      $region14: #{cnn_block_forward.3} parent=11 // pred_check_branch
        %120 = sbr.rel (%p118) target = $region16
      $region15: #{cnn_block_forward.3} parent=11 // pred_region
        _
      $region16: #{cnn_block_forward.3} parent=11 // pred_fallthru
        _
      // Predicated region
      $region17: #{cnn_block_forward.3} parent=11 // pred_check
        %p121 = pneg %p77
      $region18: #{cnn_block_forward.3} parent=11 // pred_check_branch
        %123 = sbr.rel (%p121) target = $region20
      $region19: #{cnn_block_forward.3} parent=11 // pred_region
        _
      $region20: #{cnn_block_forward.3} parent=11 // pred_fallthru
        _
    $region12: #{cnn_block_forward.3} parent=5 // pred_fallthru
      _
    %p124 = scmp.lt.s32.totalorder %s9, 2
    // Predicated region
    $region21: #{cnn_block_forward.3} parent=5 // pred_check
      %p125 = pneg %p124
    $region22: #{cnn_block_forward.3} parent=5 // pred_check_branch
      %127 = sbr.rel (%p125) target = $region24
    $region23: #{cnn_block_forward.3} parent=5 // pred_region
      // Predicated region
      $region25: #{cnn_block_forward.3} parent=23 // pred_check
        %p128 = pneg %p29
      $region26: #{cnn_block_forward.3} parent=23 // pred_check_branch
        %130 = sbr.rel (%p128) target = $region28
      $region27: #{cnn_block_forward.3} parent=23 // pred_region
        %s131 = smul.u32 32, %s9
        %p132 = scmp.lt.s32.totalorder %s131, 63
        %s133 = scalar_select %p132, %s131, 63
        %s134 = smul.addr %s133, 4
        %s135 = scalar_lea.vmem %s0, %s134
        %s136 = smul.u32 32, %s9
      $region28: #{cnn_block_forward.3} parent=23 // pred_fallthru
        _
    $region24: #{cnn_block_forward.3} parent=5 // pred_fallthru
      _
    %p137 = scmp.le.s32.totalorder 1, %s9
    %p138 = scmp.lt.s32.totalorder %s9, 3
    %p139 = pnand %p137, %p138
    %p140 = pneg %p139
    // Predicated region
    $region29: #{cnn_block_forward.3} parent=5 // pred_check
      _
    $region30: #{cnn_block_forward.3} parent=5 // pred_check_branch
      %142 = sbr.rel (%p139) target = $region32
    $region31: #{cnn_block_forward.3} parent=5 // pred_region
      %s143 = ssub.s32 %s9, 1
      %s144 = smul.u32 32, %s14
      %p145 = scmp.lt.s32.totalorder %s144, 63
      %s146 = scalar_select %p145, %s144, 63
      %s147 = smul.addr %s146, 4
      %s148 = scalar_lea.vmem %s0, %s147
      %p149 = pneg %p35
      %p150 = pneg %p32
      %p151 = pneg %p56
      %p152 = pneg %p53
      %p153 = pneg %p77
      %p154 = pneg %p74
      %p155 = pneg %p103
      %p156 = pneg %p100
      %s157 = smul.u32 32, %s14
      %p158 = scmp.lt.s32.totalorder %s157, 63
      %s159 = scalar_select %p158, %s157, 63
      %s160 = smul.addr %s159, 4
      %s161 = scalar_lea.vmem %s3, %s160
      %s162 = smul.u32 32, %s14
      %p163 = scmp.lt.s32.totalorder %s162, 63
      %s164 = scalar_select %p163, %s162, 63
      %s165 = smul.addr %s164, 4
      %s166 = scalar_lea.vmem %s0, %s165
      %s167 = smul.u32 32, %s14
      %s168 = smul.u32 32, %s14
      %p169 = scmp.lt.s32.totalorder %s168, 63
      %s170 = scalar_select %p169, %s168, 63
      %s171 = smul.addr %s170, 4
      %s172 = scalar_lea.vmem %s3, %s171
      %s173 = smul.u32 32, %s14
      %v174 = vld [vmem:[%s166] sm:$0xf]
      %v175 = vld [vmem:[%s166 + $0x4] sm:$0xf]
      %v176 = vld [vmem:[%s166 + $0x8] sm:$0xf]
      %v177 = vld [vmem:[%s166 + $0xc] sm:$0xf]
      %v178 = vld [vmem:[%s166 + $0x10] sm:$0xf]
      %v179 = vld [vmem:[%s166 + $0x14] sm:$0xf]
      %v180 = vld [vmem:[%s166 + $0x18] sm:$0xf]
      %v181 = vld [vmem:[%s166 + $0x1c] sm:$0xf]
      %v182 = vld [vmem:[%s166 + $0x20] sm:$0xf]
      %v183 = vld [vmem:[%s166 + $0x24] sm:$0xf]
      %v184 = vld [vmem:[%s166 + $0x28] sm:$0xf]
      %v185 = vld [vmem:[%s166 + $0x2c] sm:$0xf]
      %v186 = vld [vmem:[%s166 + $0x30] sm:$0xf]
      %v187 = vld [vmem:[%s166 + $0x34] sm:$0xf]
      %v188 = vld [vmem:[%s166 + $0x38] sm:$0xf]
      %v189 = vld [vmem:[%s166 + $0x3c] sm:$0xf]
      %v190 = vld [vmem:[%s166 + $0x40] sm:$0xf]
      %v191 = vld [vmem:[%s166 + $0x44] sm:$0xf]
      %v192 = vld [vmem:[%s166 + $0x48] sm:$0xf]
      %v193 = vld [vmem:[%s166 + $0x4c] sm:$0xf]
      %v194 = vld [vmem:[%s166 + $0x50] sm:$0xf]
      %v195 = vld [vmem:[%s166 + $0x54] sm:$0xf]
      %v196 = vld [vmem:[%s166 + $0x58] sm:$0xf]
      %v197 = vld [vmem:[%s166 + $0x5c] sm:$0xf]
      %v198 = vld [vmem:[%s166 + $0x60] sm:$0xf]
      %v199 = vld [vmem:[%s166 + $0x64] sm:$0xf]
      %v200 = vld [vmem:[%s166 + $0x68] sm:$0xf]
      %v201 = vld [vmem:[%s166 + $0x6c] sm:$0xf]
      %v202 = vld [vmem:[%s166 + $0x70] sm:$0xf]
      %v203 = vld [vmem:[%s166 + $0x74] sm:$0xf]
      %v204 = vld [vmem:[%s166 + $0x78] sm:$0xf]
      %v205 = vld [vmem:[%s166 + $0x7c] sm:$0xf]
      %v206 = vunpack.c.l.bf16 %v174
      %v207 = vunpack.c.l.bf16 %v175
      %v208 = vunpack.c.l.bf16 %v176
      %v209 = vunpack.c.l.bf16 %v177
      %v210 = vunpack.c.l.bf16 %v178
      %v211 = vunpack.c.l.bf16 %v179
      %v212 = vunpack.c.l.bf16 %v180
      %v213 = vunpack.c.l.bf16 %v181
      %v214 = vunpack.c.l.bf16 %v182
      %v215 = vunpack.c.l.bf16 %v183
      %v216 = vunpack.c.l.bf16 %v184
      %v217 = vunpack.c.l.bf16 %v185
      %v218 = vunpack.c.l.bf16 %v186
      %v219 = vunpack.c.l.bf16 %v187
      %v220 = vunpack.c.l.bf16 %v188
      %v221 = vunpack.c.l.bf16 %v189
      %v222 = vunpack.c.l.bf16 %v190
      %v223 = vunpack.c.l.bf16 %v191
      %v224 = vunpack.c.l.bf16 %v192
      %v225 = vunpack.c.l.bf16 %v193
      %v226 = vunpack.c.l.bf16 %v194
      %v227 = vunpack.c.l.bf16 %v195
      %v228 = vunpack.c.l.bf16 %v196
      %v229 = vunpack.c.l.bf16 %v197
      %v230 = vunpack.c.l.bf16 %v198
      %v231 = vunpack.c.l.bf16 %v199
      %v232 = vunpack.c.l.bf16 %v200
      %v233 = vunpack.c.l.bf16 %v201
      %v234 = vunpack.c.l.bf16 %v202
      %v235 = vunpack.c.l.bf16 %v203
      %v236 = vunpack.c.l.bf16 %v204
      %v237 = vunpack.c.l.bf16 %v205
      %v238 = vld [vmem:[%s1] sm:$0x1]
      %v240 = vlaneseq
      %v241 = vshrl.u32 %v240, 7
      %v242 = vsub.s32 0, %v241
      %v243 = vrot.slane %v238, %v242
      %v245 = vmul.f32 %v206, %v243
      %v246 = vmul.f32 %v207, %v243
      %v247 = vmul.f32 %v208, %v243
      %v248 = vmul.f32 %v209, %v243
      %v249 = vmul.f32 %v210, %v243
      %v250 = vmul.f32 %v211, %v243
      %v251 = vmul.f32 %v212, %v243
      %v252 = vmul.f32 %v213, %v243
      %v253 = vmul.f32 %v214, %v243
      %v254 = vmul.f32 %v215, %v243
      %v255 = vmul.f32 %v216, %v243
      %v256 = vmul.f32 %v217, %v243
      %v257 = vmul.f32 %v218, %v243
      %v258 = vmul.f32 %v219, %v243
      %v259 = vmul.f32 %v220, %v243
      %v260 = vmul.f32 %v221, %v243
      %v261 = vmul.f32 %v222, %v243
      %v262 = vmul.f32 %v223, %v243
      %v263 = vmul.f32 %v224, %v243
      %v264 = vmul.f32 %v225, %v243
      %v265 = vmul.f32 %v226, %v243
      %v266 = vmul.f32 %v227, %v243
      %v267 = vmul.f32 %v228, %v243
      %v268 = vmul.f32 %v229, %v243
      %v269 = vmul.f32 %v230, %v243
      %v270 = vmul.f32 %v231, %v243
      %v271 = vmul.f32 %v232, %v243
      %v272 = vmul.f32 %v233, %v243
      %v273 = vmul.f32 %v234, %v243
      %v274 = vmul.f32 %v235, %v243
      %v275 = vmul.f32 %v236, %v243
      %v276 = vmul.f32 %v237, %v243
      %v277 = vld [vmem:[%s2] sm:$0x1]
      %v279 = vlaneseq
      %v280 = vshrl.u32 %v279, 7
      %v281 = vsub.s32 0, %v280
      %v282 = vrot.slane %v277, %v281
      %v284 = vadd.f32 %v245, %v282
      %v285 = vadd.f32 %v246, %v282
      %v286 = vadd.f32 %v247, %v282
      %v287 = vadd.f32 %v248, %v282
      %v288 = vadd.f32 %v249, %v282
      %v289 = vadd.f32 %v250, %v282
      %v290 = vadd.f32 %v251, %v282
      %v291 = vadd.f32 %v252, %v282
      %v292 = vadd.f32 %v253, %v282
      %v293 = vadd.f32 %v254, %v282
      %v294 = vadd.f32 %v255, %v282
      %v295 = vadd.f32 %v256, %v282
      %v296 = vadd.f32 %v257, %v282
      %v297 = vadd.f32 %v258, %v282
      %v298 = vadd.f32 %v259, %v282
      %v299 = vadd.f32 %v260, %v282
      %v300 = vadd.f32 %v261, %v282
      %v301 = vadd.f32 %v262, %v282
      %v302 = vadd.f32 %v263, %v282
      %v303 = vadd.f32 %v264, %v282
      %v304 = vadd.f32 %v265, %v282
      %v305 = vadd.f32 %v266, %v282
      %v306 = vadd.f32 %v267, %v282
      %v307 = vadd.f32 %v268, %v282
      %v308 = vadd.f32 %v269, %v282
      %v309 = vadd.f32 %v270, %v282
      %v310 = vadd.f32 %v271, %v282
      %v311 = vadd.f32 %v272, %v282
      %v312 = vadd.f32 %v273, %v282
      %v313 = vadd.f32 %v274, %v282
      %v314 = vadd.f32 %v275, %v282
      %v315 = vadd.f32 %v276, %v282
      %vm316 = vcmp.ge.f32.partialorder %v284, 0.0
      %vm317 = vcmp.ge.f32.partialorder %v285, 0.0
      %vm318 = vcmp.ge.f32.partialorder %v286, 0.0
      %vm319 = vcmp.ge.f32.partialorder %v287, 0.0
      %vm320 = vcmp.ge.f32.partialorder %v288, 0.0
      %vm321 = vcmp.ge.f32.partialorder %v289, 0.0
      %vm322 = vcmp.ge.f32.partialorder %v290, 0.0
      %vm323 = vcmp.ge.f32.partialorder %v291, 0.0
      %vm324 = vcmp.ge.f32.partialorder %v292, 0.0
      %vm325 = vcmp.ge.f32.partialorder %v293, 0.0
      %vm326 = vcmp.ge.f32.partialorder %v294, 0.0
      %vm327 = vcmp.ge.f32.partialorder %v295, 0.0
      %vm328 = vcmp.ge.f32.partialorder %v296, 0.0
      %vm329 = vcmp.ge.f32.partialorder %v297, 0.0
      %vm330 = vcmp.ge.f32.partialorder %v298, 0.0
      %vm331 = vcmp.ge.f32.partialorder %v299, 0.0
      %vm332 = vcmp.ge.f32.partialorder %v300, 0.0
      %vm333 = vcmp.ge.f32.partialorder %v301, 0.0
      %vm334 = vcmp.ge.f32.partialorder %v302, 0.0
      %vm335 = vcmp.ge.f32.partialorder %v303, 0.0
      %vm336 = vcmp.ge.f32.partialorder %v304, 0.0
      %vm337 = vcmp.ge.f32.partialorder %v305, 0.0
      %vm338 = vcmp.ge.f32.partialorder %v306, 0.0
      %vm339 = vcmp.ge.f32.partialorder %v307, 0.0
      %vm340 = vcmp.ge.f32.partialorder %v308, 0.0
      %vm341 = vcmp.ge.f32.partialorder %v309, 0.0
      %vm342 = vcmp.ge.f32.partialorder %v310, 0.0
      %vm343 = vcmp.ge.f32.partialorder %v311, 0.0
      %vm344 = vcmp.ge.f32.partialorder %v312, 0.0
      %vm345 = vcmp.ge.f32.partialorder %v313, 0.0
      %vm346 = vcmp.ge.f32.partialorder %v314, 0.0
      %vm347 = vcmp.ge.f32.partialorder %v315, 0.0
      %v348 = vmul.f32 %v284, 0.1
      %v349 = vmul.f32 %v285, 0.1
      %v350 = vmul.f32 %v286, 0.1
      %v351 = vmul.f32 %v287, 0.1
      %v352 = vmul.f32 %v288, 0.1
      %v353 = vmul.f32 %v289, 0.1
      %v354 = vmul.f32 %v290, 0.1
      %v355 = vmul.f32 %v291, 0.1
      %v356 = vmul.f32 %v292, 0.1
      %v357 = vmul.f32 %v293, 0.1
      %v358 = vmul.f32 %v294, 0.1
      %v359 = vmul.f32 %v295, 0.1
      %v360 = vmul.f32 %v296, 0.1
      %v361 = vmul.f32 %v297, 0.1
      %v362 = vmul.f32 %v298, 0.1
      %v363 = vmul.f32 %v299, 0.1
      %v364 = vmul.f32 %v300, 0.1
      %v365 = vmul.f32 %v301, 0.1
      %v366 = vmul.f32 %v302, 0.1
      %v367 = vmul.f32 %v303, 0.1
      %v368 = vmul.f32 %v304, 0.1
      %v369 = vmul.f32 %v305, 0.1
      %v370 = vmul.f32 %v306, 0.1
      %v371 = vmul.f32 %v307, 0.1
      %v372 = vmul.f32 %v308, 0.1
      %v373 = vmul.f32 %v309, 0.1
      %v374 = vmul.f32 %v310, 0.1
      %v375 = vmul.f32 %v311, 0.1
      %v376 = vmul.f32 %v312, 0.1
      %v377 = vmul.f32 %v313, 0.1
      %v378 = vmul.f32 %v314, 0.1
      %v379 = vmul.f32 %v315, 0.1
      %v380 = vsel %vm316, %v284, %v348
      %v381 = vsel %vm317, %v285, %v349
      %v382 = vsel %vm318, %v286, %v350
      %v383 = vsel %vm319, %v287, %v351
      %v384 = vsel %vm320, %v288, %v352
      %v385 = vsel %vm321, %v289, %v353
      %v386 = vsel %vm322, %v290, %v354
      %v387 = vsel %vm323, %v291, %v355
      %v388 = vsel %vm324, %v292, %v356
      %v389 = vsel %vm325, %v293, %v357
      %v390 = vsel %vm326, %v294, %v358
      %v391 = vsel %vm327, %v295, %v359
      %v392 = vsel %vm328, %v296, %v360
      %v393 = vsel %vm329, %v297, %v361
      %v394 = vsel %vm330, %v298, %v362
      %v395 = vsel %vm331, %v299, %v363
      %v396 = vsel %vm332, %v300, %v364
      %v397 = vsel %vm333, %v301, %v365
      %v398 = vsel %vm334, %v302, %v366
      %v399 = vsel %vm335, %v303, %v367
      %v400 = vsel %vm336, %v304, %v368
      %v401 = vsel %vm337, %v305, %v369
      %v402 = vsel %vm338, %v306, %v370
      %v403 = vsel %vm339, %v307, %v371
      %v404 = vsel %vm340, %v308, %v372
      %v405 = vsel %vm341, %v309, %v373
      %v406 = vsel %vm342, %v310, %v374
      %v407 = vsel %vm343, %v311, %v375
      %v408 = vsel %vm344, %v312, %v376
      %v409 = vsel %vm345, %v313, %v377
      %v410 = vsel %vm346, %v314, %v378
      %v411 = vsel %vm347, %v315, %v379
      %v412 = vpack.c.bf16 %v381, %v380
      %v413 = vpack.c.bf16 %v383, %v382
      %v414 = vpack.c.bf16 %v385, %v384
      %v415 = vpack.c.bf16 %v387, %v386
      %v416 = vpack.c.bf16 %v389, %v388
      %v417 = vpack.c.bf16 %v391, %v390
      %v418 = vpack.c.bf16 %v393, %v392
      %v419 = vpack.c.bf16 %v395, %v394
      %v420 = vpack.c.bf16 %v397, %v396
      %v421 = vpack.c.bf16 %v399, %v398
      %v422 = vpack.c.bf16 %v401, %v400
      %v423 = vpack.c.bf16 %v403, %v402
      %v424 = vpack.c.bf16 %v405, %v404
      %v425 = vpack.c.bf16 %v407, %v406
      %v426 = vpack.c.bf16 %v409, %v408
      %v427 = vpack.c.bf16 %v411, %v410
      %v444 = vunpack.c.l.b16 %v412
      %v445 = vunpack.c.h.b16 %v412
      %v446 = vunpack.c.l.b16 %v413
      %v447 = vunpack.c.h.b16 %v413
      %v448 = vunpack.c.l.b16 %v414
      %v449 = vunpack.c.h.b16 %v414
      %v450 = vunpack.c.l.b16 %v415
      %v451 = vunpack.c.h.b16 %v415
      %v452 = vunpack.c.l.b16 %v416
      %v453 = vunpack.c.h.b16 %v416
      %v454 = vunpack.c.l.b16 %v417
      %v455 = vunpack.c.h.b16 %v417
      %v456 = vunpack.c.l.b16 %v418
      %v457 = vunpack.c.h.b16 %v418
      %v458 = vunpack.c.l.b16 %v419
      %v459 = vunpack.c.h.b16 %v419
      %v460 = vunpack.c.l.b16 %v420
      %v461 = vunpack.c.h.b16 %v420
      %v462 = vunpack.c.l.b16 %v421
      %v463 = vunpack.c.h.b16 %v421
      %v464 = vunpack.c.l.b16 %v422
      %v465 = vunpack.c.h.b16 %v422
      %v466 = vunpack.c.l.b16 %v423
      %v467 = vunpack.c.h.b16 %v423
      %v468 = vunpack.c.l.b16 %v424
      %v469 = vunpack.c.h.b16 %v424
      %v470 = vunpack.c.l.b16 %v425
      %v471 = vunpack.c.h.b16 %v425
      %v472 = vunpack.c.l.b16 %v426
      %v473 = vunpack.c.h.b16 %v426
      %v474 = vunpack.c.l.b16 %v427
      %v475 = vunpack.c.h.b16 %v427
      %v476 = vpack.c.b16 %v444, %v444
      %v477 = vpack.c.b16 %v445, %v445
      %v478 = vpack.c.b16 %v446, %v446
      %v479 = vpack.c.b16 %v447, %v447
      %v480 = vpack.c.b16 %v448, %v448
      %v481 = vpack.c.b16 %v449, %v449
      %v482 = vpack.c.b16 %v450, %v450
      %v483 = vpack.c.b16 %v451, %v451
      %v484 = vpack.c.b16 %v452, %v452
      %v485 = vpack.c.b16 %v453, %v453
      %v486 = vpack.c.b16 %v454, %v454
      %v487 = vpack.c.b16 %v455, %v455
      %v488 = vpack.c.b16 %v456, %v456
      %v489 = vpack.c.b16 %v457, %v457
      %v490 = vpack.c.b16 %v458, %v458
      %v491 = vpack.c.b16 %v459, %v459
      %v492 = vpack.c.b16 %v460, %v460
      %v493 = vpack.c.b16 %v461, %v461
      %v494 = vpack.c.b16 %v462, %v462
      %v495 = vpack.c.b16 %v463, %v463
      %v496 = vpack.c.b16 %v464, %v464
      %v497 = vpack.c.b16 %v465, %v465
      %v498 = vpack.c.b16 %v466, %v466
      %v499 = vpack.c.b16 %v467, %v467
      %v500 = vpack.c.b16 %v468, %v468
      %v501 = vpack.c.b16 %v469, %v469
      %v502 = vpack.c.b16 %v470, %v470
      %v503 = vpack.c.b16 %v471, %v471
      %v504 = vpack.c.b16 %v472, %v472
      %v505 = vpack.c.b16 %v473, %v473
      %v506 = vpack.c.b16 %v474, %v474
      %v507 = vpack.c.b16 %v475, %v475
      %540 = vst [vmem:[%s172] sm:$0xf] %v476
      %541 = vst [vmem:[%s172 + $0x4] sm:$0xf] %v477
      %542 = vst [vmem:[%s172 + $0x8] sm:$0xf] %v478
      %543 = vst [vmem:[%s172 + $0xc] sm:$0xf] %v479
      %544 = vst [vmem:[%s172 + $0x10] sm:$0xf] %v480
      %545 = vst [vmem:[%s172 + $0x14] sm:$0xf] %v481
      %546 = vst [vmem:[%s172 + $0x18] sm:$0xf] %v482
      %547 = vst [vmem:[%s172 + $0x1c] sm:$0xf] %v483
      %548 = vst [vmem:[%s172 + $0x20] sm:$0xf] %v484
      %549 = vst [vmem:[%s172 + $0x24] sm:$0xf] %v485
      %550 = vst [vmem:[%s172 + $0x28] sm:$0xf] %v486
      %551 = vst [vmem:[%s172 + $0x2c] sm:$0xf] %v487
      %552 = vst [vmem:[%s172 + $0x30] sm:$0xf] %v488
      %553 = vst [vmem:[%s172 + $0x34] sm:$0xf] %v489
      %554 = vst [vmem:[%s172 + $0x38] sm:$0xf] %v490
      %555 = vst [vmem:[%s172 + $0x3c] sm:$0xf] %v491
      %556 = vst [vmem:[%s172 + $0x40] sm:$0xf] %v492
      %557 = vst [vmem:[%s172 + $0x44] sm:$0xf] %v493
      %558 = vst [vmem:[%s172 + $0x48] sm:$0xf] %v494
      %559 = vst [vmem:[%s172 + $0x4c] sm:$0xf] %v495
      %560 = vst [vmem:[%s172 + $0x50] sm:$0xf] %v496
      %561 = vst [vmem:[%s172 + $0x54] sm:$0xf] %v497
      %562 = vst [vmem:[%s172 + $0x58] sm:$0xf] %v498
      %563 = vst [vmem:[%s172 + $0x5c] sm:$0xf] %v499
      %564 = vst [vmem:[%s172 + $0x60] sm:$0xf] %v500
      %565 = vst [vmem:[%s172 + $0x64] sm:$0xf] %v501
      %566 = vst [vmem:[%s172 + $0x68] sm:$0xf] %v502
      %567 = vst [vmem:[%s172 + $0x6c] sm:$0xf] %v503
      %568 = vst [vmem:[%s172 + $0x70] sm:$0xf] %v504
      %569 = vst [vmem:[%s172 + $0x74] sm:$0xf] %v505
      %570 = vst [vmem:[%s172 + $0x78] sm:$0xf] %v506
      %571 = vst [vmem:[%s172 + $0x7c] sm:$0xf] %v507
      %s572 = smul.u32 32, %s14
      %p573 = scmp.lt.s32.totalorder %s572, 63
      %s574 = scalar_select %p573, %s572, 63
      %s575 = smul.addr %s574, 4
      %s576 = scalar_lea.vmem %s3, %s575
      // Predicated region
      $region33: #{cnn_block_forward.3} parent=31 // pred_check
        %p577 = pneg %p100
      $region34: #{cnn_block_forward.3} parent=31 // pred_check_branch
        %579 = sbr.rel (%p577) target = $region36
      $region35: #{cnn_block_forward.3} parent=31 // pred_region
        %s580 = smul.u32 32, %s14
      $region36: #{cnn_block_forward.3} parent=31 // pred_fallthru
        _
    $region32: #{cnn_block_forward.3} parent=5 // pred_fallthru
      _
    %p581 = scmp.le.s32.totalorder 2, %s9
    // Predicated region
    $region37: #{cnn_block_forward.3} parent=5 // pred_check
      %p582 = pneg %p581
    $region38: #{cnn_block_forward.3} parent=5 // pred_check_branch
      %584 = sbr.rel (%p582) target = $region40
    $region39: #{cnn_block_forward.3} parent=5 // pred_region
      %s585 = ssub.s32 %s9, 2
      // Predicated region
      $region41: #{cnn_block_forward.3} parent=39 // pred_check
        %p586 = pneg %p106
      $region42: #{cnn_block_forward.3} parent=39 // pred_check_branch
        %588 = sbr.rel (%p586) target = $region44
      $region43: #{cnn_block_forward.3} parent=39 // pred_region
        %s589 = smul.u32 32, %s15
        %p590 = scmp.lt.s32.totalorder %s589, 63
        %s591 = scalar_select %p590, %s589, 63
        %s592 = smul.addr %s591, 4
        %s593 = scalar_lea.vmem %s3, %s592
      $region44: #{cnn_block_forward.3} parent=39 // pred_fallthru
        _
    $region40: #{cnn_block_forward.3} parent=5 // pred_fallthru
      _
  $region6: #{cnn_block_forward.3} parent=0 // loop_footer
    %s13 = sadd.s32 1, %s9
  $region7: #{cnn_block_forward.3} parent=0 // loop_footer_branch
    %8 = sbr.rel target = $region3
  $region8: #{cnn_block_forward.3} parent=0 // loop_exit
    _

// kernel: cnn_block_forward.2
$region0: #{cnn_block_forward.2}
  #allocation0 [shape = 'u32[]', space=smem, size = 0x4, offset = 0x4, fixed_abs, tag = 'smem constant byte address 0x4 - core index']
  #allocation1 [shape = 'u32[144,128]{1,0:T(1,128)}', space=vmem, size = 0x12000, scoped, tag = 'internal scratch']
  #allocation2 [shape = 'f32[256,128]{1,0:T(8,128)}', space=vmem, size = 0x20000, scoped, tag = 'scratch operand']
  %s0 = inlined_call_operand.vmem [shape: bf16[512,128], index: 0, kind: input, shape index: {}]
  %s1 = inlined_call_operand.vmem [shape: bf16[128,128], index: 1, kind: input, shape index: {}]
  %s2 = inlined_call_operand.vmem [shape: bf16[512,128], index: 2, kind: output, shape index: {0}]
  %s3 = inlined_call_operand.vmem [shape: f32[2,8,128], index: 3, kind: output, shape index: {1}]
  %s4 = inlined_call_operand.vmem [shape: f32[2,8,128], index: 4, kind: output, shape index: {2}]
  %5 = xla_tuple %s2, %s3, %s4
  %s6 = sld [smem:[#allocation0]]
  $region57: #{cnn_block_forward.2} parent=0
    _
  %s8 = ssub.s32 1, %s6
  %s9 = scalar_select 0, %s8, %s6
  loop: start=0, step=1, limit=4
  $region2: #{cnn_block_forward.2} parent=0 // loop_pre_header
    _
  $region3: #{cnn_block_forward.2} parent=0 // loop_header
    %s11 = sphi 0, %s15
    %p12 = scmp.ge.s32.totalorder %s11, 4
    %s21 = sphi 0, %s23
    %s24 = sphi 0, %s21
    %s25 = sphi 0, %s24
    %s41 = sphi 0, %s25
    %s45 = sphi 0, %s45
    %s47 = sphi 0, %s45
    %s48 = sphi 0, %s47
    %s62 = sphi 0, %s48
    %s68 = sphi 0, %s70
    %s71 = sphi 0, %s68
    %s72 = sphi 0, %s71
    %s88 = sphi 0, %s72
    %s94 = sphi 0, %s96
    %s97 = sphi 0, %s94
    %s98 = sphi 0, %s97
    %s114 = sphi 0, %s98
    %s120 = sphi 0, %s122
    %s123 = sphi 0, %s120
    %s124 = sphi 0, %s123
    %s140 = sphi 0, %s124
  $region4: #{cnn_block_forward.2} parent=0 // loop_header_branch
    %14 = sbr.rel (%p12) target = $region8
  $region5: #{cnn_block_forward.2} parent=0 // loop_body
    %s16 = ssub.s32 %s11, 1
    %s17 = ssub.s32 %s11, 2
    %s18 = sadd.s32 %s11, 1
    %s19 = ssub.s32 %s11, %s18
    %p20 = scmp.eq.s32.totalorder %s19, 0
    %s22 = sadd.s32 %s21, 1
    %s23 = scalar_select %p20, %s21, %s22
    %p26 = pneg %p20
    %p27 = scmp.eq.s32.totalorder %s11, 1
    %p28 = por %p26, %p27
    %p29 = scmp.ne.s32.totalorder %s21, %s24
    %p30 = scmp.eq.s32.totalorder %s11, 0
    %p31 = por %p29, %p30
    %p32 = scmp.ne.s32.totalorder %s21, %s24
    %p33 = scmp.eq.s32.totalorder %s16, 1
    %p34 = por %p32, %p33
    %p35 = scmp.ne.s32.totalorder %s24, %s25
    %p36 = scmp.eq.s32.totalorder %s16, 0
    %p37 = por %p35, %p36
    %p38 = scmp.ne.s32.totalorder %s24, %s25
    %p39 = scmp.eq.s32.totalorder %s17, 1
    %p40 = por %p38, %p39
    %p42 = scmp.ne.s32.totalorder %s25, %s41
    %p43 = scmp.eq.s32.totalorder %s17, 0
    %p44 = por %p42, %p43
    %s46 = sadd.s32 %s45, 1
    %p49 = scmp.eq.s32.totalorder %s11, 1
    %p50 = scmp.ne.s32.totalorder %s45, %s47
    %p51 = scmp.eq.s32.totalorder %s11, 0
    %p52 = por %p50, %p51
    %p53 = scmp.ne.s32.totalorder %s45, %s47
    %p54 = scmp.eq.s32.totalorder %s16, 1
    %p55 = por %p53, %p54
    %p56 = scmp.ne.s32.totalorder %s47, %s48
    %p57 = scmp.eq.s32.totalorder %s16, 0
    %p58 = por %p56, %p57
    %p59 = scmp.ne.s32.totalorder %s47, %s48
    %p60 = scmp.eq.s32.totalorder %s17, 1
    %p61 = por %p59, %p60
    %p63 = scmp.ne.s32.totalorder %s48, %s62
    %p64 = scmp.eq.s32.totalorder %s17, 0
    %p65 = por %p63, %p64
    %s66 = ssub.s32 %s11, %s18
    %p67 = scmp.eq.s32.totalorder %s66, 0
    %s69 = sadd.s32 %s68, 1
    %s70 = scalar_select %p67, %s68, %s69
    %p73 = pneg %p67
    %p74 = scmp.eq.s32.totalorder %s11, 1
    %p75 = por %p73, %p74
    %p76 = scmp.ne.s32.totalorder %s68, %s71
    %p77 = scmp.eq.s32.totalorder %s11, 0
    %p78 = por %p76, %p77
    %p79 = scmp.ne.s32.totalorder %s68, %s71
    %p80 = scmp.eq.s32.totalorder %s16, 1
    %p81 = por %p79, %p80
    %p82 = scmp.ne.s32.totalorder %s71, %s72
    %p83 = scmp.eq.s32.totalorder %s16, 0
    %p84 = por %p82, %p83
    %p85 = scmp.ne.s32.totalorder %s71, %s72
    %p86 = scmp.eq.s32.totalorder %s17, 1
    %p87 = por %p85, %p86
    %p89 = scmp.ne.s32.totalorder %s72, %s88
    %p90 = scmp.eq.s32.totalorder %s17, 0
    %p91 = por %p89, %p90
    %s92 = ssub.s32 %s11, %s18
    %p93 = scmp.eq.s32.totalorder %s92, 0
    %s95 = sadd.s32 %s94, 1
    %s96 = scalar_select %p93, %s94, %s95
    %p99 = pneg %p93
    %p100 = scmp.eq.s32.totalorder %s11, 1
    %p101 = por %p99, %p100
    %p102 = scmp.ne.s32.totalorder %s94, %s97
    %p103 = scmp.eq.s32.totalorder %s11, 0
    %p104 = por %p102, %p103
    %p105 = scmp.ne.s32.totalorder %s94, %s97
    %p106 = scmp.eq.s32.totalorder %s16, 1
    %p107 = por %p105, %p106
    %p108 = scmp.ne.s32.totalorder %s97, %s98
    %p109 = scmp.eq.s32.totalorder %s16, 0
    %p110 = por %p108, %p109
    %p111 = scmp.ne.s32.totalorder %s97, %s98
    %p112 = scmp.eq.s32.totalorder %s17, 1
    %p113 = por %p111, %p112
    %p115 = scmp.ne.s32.totalorder %s98, %s114
    %p116 = scmp.eq.s32.totalorder %s17, 0
    %p117 = por %p115, %p116
    %s118 = ssub.s32 %s11, %s18
    %p119 = scmp.eq.s32.totalorder %s118, 0
    %s121 = sadd.s32 %s120, 1
    %s122 = scalar_select %p119, %s120, %s121
    %p125 = pneg %p119
    %p126 = scmp.eq.s32.totalorder %s11, 1
    %p127 = por %p125, %p126
    %p128 = scmp.ne.s32.totalorder %s120, %s123
    %p129 = scmp.eq.s32.totalorder %s11, 0
    %p130 = por %p128, %p129
    %p131 = scmp.ne.s32.totalorder %s120, %s123
    %p132 = scmp.eq.s32.totalorder %s16, 1
    %p133 = por %p131, %p132
    %p134 = scmp.ne.s32.totalorder %s123, %s124
    %p135 = scmp.eq.s32.totalorder %s16, 0
    %p136 = por %p134, %p135
    %p137 = scmp.ne.s32.totalorder %s123, %s124
    %p138 = scmp.eq.s32.totalorder %s17, 1
    %p139 = por %p137, %p138
    %p141 = scmp.ne.s32.totalorder %s124, %s140
    %p142 = scmp.eq.s32.totalorder %s17, 0
    %p143 = por %p141, %p142
    %p144 = scmp.le.s32.totalorder 1, %s11
    %p145 = scmp.lt.s32.totalorder %s11, 3
    %p146 = pnand %p144, %p145
    %p147 = pneg %p146
    // Predicated region
    $region9: #{cnn_block_forward.2} parent=5 // pred_check
      _
    $region10: #{cnn_block_forward.2} parent=5 // pred_check_branch
      %149 = sbr.rel (%p146) target = $region12
    $region11: #{cnn_block_forward.2} parent=5 // pred_region
      %s150 = ssub.s32 %s11, 1
      // Predicated region
      $region13: #{cnn_block_forward.2} parent=11 // pred_check
        %p151 = pneg %p58
      $region14: #{cnn_block_forward.2} parent=11 // pred_check_branch
        %153 = sbr.rel (%p151) target = $region16
      $region15: #{cnn_block_forward.2} parent=11 // pred_region
        _
      $region16: #{cnn_block_forward.2} parent=11 // pred_fallthru
        _
    $region12: #{cnn_block_forward.2} parent=5 // pred_fallthru
      _
    %p154 = scmp.lt.s32.totalorder %s11, 2
    // Predicated region
    $region17: #{cnn_block_forward.2} parent=5 // pred_check
      %p155 = pneg %p154
    $region18: #{cnn_block_forward.2} parent=5 // pred_check_branch
      %157 = sbr.rel (%p155) target = $region20
    $region19: #{cnn_block_forward.2} parent=5 // pred_region
      // Predicated region
      $region21: #{cnn_block_forward.2} parent=19 // pred_check
        %p158 = pneg %p31
      $region22: #{cnn_block_forward.2} parent=19 // pred_check_branch
        %160 = sbr.rel (%p158) target = $region24
      $region23: #{cnn_block_forward.2} parent=19 // pred_region
        %s161 = smul.u32 32, %s11
        %p162 = scmp.lt.s32.totalorder %s161, 63
        %s163 = scalar_select %p162, %s161, 63
        %s164 = smul.addr %s163, 4
        %s165 = scalar_lea.vmem %s0, %s164
        %s166 = smul.u32 32, %s11
      $region24: #{cnn_block_forward.2} parent=19 // pred_fallthru
        _
    $region20: #{cnn_block_forward.2} parent=5 // pred_fallthru
      _
    %p167 = scmp.le.s32.totalorder 1, %s11
    %p168 = scmp.lt.s32.totalorder %s11, 3
    %p169 = pnand %p167, %p168
    %p170 = pneg %p169
    // Predicated region
    $region25: #{cnn_block_forward.2} parent=5 // pred_check
      _
    $region26: #{cnn_block_forward.2} parent=5 // pred_check_branch
      %172 = sbr.rel (%p169) target = $region28
    $region27: #{cnn_block_forward.2} parent=5 // pred_region
      %s173 = ssub.s32 %s11, 1
      %s174 = smul.u32 32, %s16
      %p175 = scmp.lt.s32.totalorder %s174, 63
      %s176 = scalar_select %p175, %s174, 63
      %s177 = smul.addr %s176, 4
      %s178 = scalar_lea.vmem %s0, %s177
      %p179 = pneg %p37
      %p180 = pneg %p34
      %p181 = pneg %p58
      %p182 = pneg %p55
      %p183 = pneg %p84
      %p184 = pneg %p81
      %s185 = smul.u32 32, %s16
      %p186 = scmp.lt.s32.totalorder %s185, 63
      %s187 = scalar_select %p186, %s185, 63
      %s188 = smul.addr %s187, 4
      %s189 = scalar_lea.vmem %s2, %s188
      %p190 = pneg %p110
      %p191 = pneg %p107
      %p192 = scmp.lt.s32.totalorder %s16, 1
      %s193 = scalar_select %p192, %s16, 1
      %s194 = smul.addr %s193, 8
      %s195 = scalar_lea.vmem %s3, %s194
      %p196 = pneg %p136
      %p197 = pneg %p133
      %p198 = scmp.lt.s32.totalorder %s16, 1
      %s199 = scalar_select %p198, %s16, 1
      %s200 = smul.addr %s199, 8
      %s201 = scalar_lea.vmem %s4, %s200
      %s202 = smul.u32 32, %s16
      %p203 = scmp.lt.s32.totalorder %s202, 63
      %s204 = scalar_select %p203, %s202, 63
      %s205 = smul.addr %s204, 4
      %s206 = scalar_lea.vmem %s0, %s205
      %s207 = smul.u32 32, %s16
      %s208 = smul.u32 32, %s16
      %p209 = scmp.lt.s32.totalorder %s208, 63
      %s210 = scalar_select %p209, %s208, 63
      %s211 = smul.addr %s210, 4
      %s212 = scalar_lea.vmem %s2, %s211
      %s213 = smul.u32 32, %s16
      %p214 = scmp.lt.s32.totalorder %s16, 1
      %s215 = scalar_select %p214, %s16, 1
      %s216 = smul.addr %s215, 8
      %s217 = scalar_lea.vmem %s3, %s216
      %p218 = scmp.lt.s32.totalorder %s16, 1
      %s219 = scalar_select %p218, %s16, 1
      %s220 = smul.addr %s219, 8
      %s221 = scalar_lea.vmem %s4, %s220
      %v223 = vld [vmem:[%s206] sm:$0xf]
      %v224 = vld [vmem:[%s206 + $0x4] sm:$0xf]
      %v225 = vld [vmem:[%s206 + $0x8] sm:$0xf]
      %v226 = vld [vmem:[%s206 + $0xc] sm:$0xf]
      %v227 = vld [vmem:[%s206 + $0x10] sm:$0xf]
      %v228 = vld [vmem:[%s206 + $0x14] sm:$0xf]
      %v229 = vld [vmem:[%s206 + $0x18] sm:$0xf]
      %v230 = vld [vmem:[%s206 + $0x1c] sm:$0xf]
      %v231 = vld [vmem:[%s206 + $0x20] sm:$0xf]
      %v232 = vld [vmem:[%s206 + $0x24] sm:$0xf]
      %v233 = vld [vmem:[%s206 + $0x28] sm:$0xf]
      %v234 = vld [vmem:[%s206 + $0x2c] sm:$0xf]
      %v235 = vld [vmem:[%s206 + $0x30] sm:$0xf]
      %v236 = vld [vmem:[%s206 + $0x34] sm:$0xf]
      %v237 = vld [vmem:[%s206 + $0x38] sm:$0xf]
      %v238 = vld [vmem:[%s206 + $0x3c] sm:$0xf]
      %v239 = vld [vmem:[%s206 + $0x40] sm:$0xf]
      %v240 = vld [vmem:[%s206 + $0x44] sm:$0xf]
      %v241 = vld [vmem:[%s206 + $0x48] sm:$0xf]
      %v242 = vld [vmem:[%s206 + $0x4c] sm:$0xf]
      %v243 = vld [vmem:[%s206 + $0x50] sm:$0xf]
      %v244 = vld [vmem:[%s206 + $0x54] sm:$0xf]
      %v245 = vld [vmem:[%s206 + $0x58] sm:$0xf]
      %v246 = vld [vmem:[%s206 + $0x5c] sm:$0xf]
      %v247 = vld [vmem:[%s206 + $0x60] sm:$0xf]
      %v248 = vld [vmem:[%s206 + $0x64] sm:$0xf]
      %v249 = vld [vmem:[%s206 + $0x68] sm:$0xf]
      %v250 = vld [vmem:[%s206 + $0x6c] sm:$0xf]
      %v251 = vld [vmem:[%s206 + $0x70] sm:$0xf]
      %v252 = vld [vmem:[%s206 + $0x74] sm:$0xf]
      %v253 = vld [vmem:[%s206 + $0x78] sm:$0xf]
      %v254 = vld [vmem:[%s206 + $0x7c] sm:$0xf]
      %v255 = vld [vmem:[%s1] sm:$0xf]
      %v256 = vld [vmem:[%s1 + $0x4] sm:$0xf]
      %v257 = vld [vmem:[%s1 + $0x8] sm:$0xf]
      %v258 = vld [vmem:[%s1 + $0xc] sm:$0xf]
      %v259 = vld [vmem:[%s1 + $0x10] sm:$0xf]
      %v260 = vld [vmem:[%s1 + $0x14] sm:$0xf]
      %v261 = vld [vmem:[%s1 + $0x18] sm:$0xf]
      %v262 = vld [vmem:[%s1 + $0x1c] sm:$0xf]
      %v263 = vld [vmem:[%s1 + $0x20] sm:$0xf]
      %v264 = vld [vmem:[%s1 + $0x24] sm:$0xf]
      %v265 = vld [vmem:[%s1 + $0x28] sm:$0xf]
      %v266 = vld [vmem:[%s1 + $0x2c] sm:$0xf]
      %v267 = vld [vmem:[%s1 + $0x30] sm:$0xf]
      %v268 = vld [vmem:[%s1 + $0x34] sm:$0xf]
      %v269 = vld [vmem:[%s1 + $0x38] sm:$0xf]
      %v270 = vld [vmem:[%s1 + $0x3c] sm:$0xf]
      %v303 = vunpack.c.l.b16 %v223
      %v304 = vunpack.c.l.b16 %v224
      %v305 = vunpack.c.l.b16 %v225
      %v306 = vunpack.c.l.b16 %v226
      %v307 = vunpack.c.l.b16 %v227
      %v308 = vunpack.c.l.b16 %v228
      %v309 = vunpack.c.l.b16 %v229
      %v310 = vunpack.c.l.b16 %v230
      %v311 = vunpack.c.l.b16 %v231
      %v312 = vunpack.c.l.b16 %v232
      %v313 = vunpack.c.l.b16 %v233
      %v314 = vunpack.c.l.b16 %v234
      %v315 = vunpack.c.l.b16 %v235
      %v316 = vunpack.c.l.b16 %v236
      %v317 = vunpack.c.l.b16 %v237
      %v318 = vunpack.c.l.b16 %v238
      %v319 = vunpack.c.l.b16 %v239
      %v320 = vunpack.c.l.b16 %v240
      %v321 = vunpack.c.l.b16 %v241
      %v322 = vunpack.c.l.b16 %v242
      %v323 = vunpack.c.l.b16 %v243
      %v324 = vunpack.c.l.b16 %v244
      %v325 = vunpack.c.l.b16 %v245
      %v326 = vunpack.c.l.b16 %v246
      %v327 = vunpack.c.l.b16 %v247
      %v328 = vunpack.c.l.b16 %v248
      %v329 = vunpack.c.l.b16 %v249
      %v330 = vunpack.c.l.b16 %v250
      %v331 = vunpack.c.l.b16 %v251
      %v332 = vunpack.c.l.b16 %v252
      %v333 = vunpack.c.l.b16 %v253
      %v334 = vunpack.c.l.b16 %v254
      %v335 = vpack.c.b16 %v304, %v303
      %v336 = vpack.c.b16 %v306, %v305
      %v337 = vpack.c.b16 %v308, %v307
      %v338 = vpack.c.b16 %v310, %v309
      %v339 = vpack.c.b16 %v312, %v311
      %v340 = vpack.c.b16 %v314, %v313
      %v341 = vpack.c.b16 %v316, %v315
      %v342 = vpack.c.b16 %v318, %v317
      %v343 = vpack.c.b16 %v320, %v319
      %v344 = vpack.c.b16 %v322, %v321
      %v345 = vpack.c.b16 %v324, %v323
      %v346 = vpack.c.b16 %v326, %v325
      %v347 = vpack.c.b16 %v328, %v327
      %v348 = vpack.c.b16 %v330, %v329
      %v349 = vpack.c.b16 %v332, %v331
      %v350 = vpack.c.b16 %v334, %v333
      %v383 = vunpack.c.l.b16 %v255
      %v384 = vunpack.c.l.b16 %v256
      %v385 = vunpack.c.l.b16 %v257
      %v386 = vunpack.c.l.b16 %v258
      %v387 = vunpack.c.l.b16 %v259
      %v388 = vunpack.c.l.b16 %v260
      %v389 = vunpack.c.l.b16 %v261
      %v390 = vunpack.c.l.b16 %v262
      %v391 = vunpack.c.l.b16 %v263
      %v392 = vunpack.c.l.b16 %v264
      %v393 = vunpack.c.l.b16 %v265
      %v394 = vunpack.c.l.b16 %v266
      %v395 = vunpack.c.l.b16 %v267
      %v396 = vunpack.c.l.b16 %v268
      %v397 = vunpack.c.l.b16 %v269
      %v398 = vunpack.c.l.b16 %v270
      %v399 = vpack.c.b16 %v384, %v383
      %v400 = vpack.c.b16 %v386, %v385
      %v401 = vpack.c.b16 %v388, %v387
      %v402 = vpack.c.b16 %v390, %v389
      %v403 = vpack.c.b16 %v392, %v391
      %v404 = vpack.c.b16 %v394, %v393
      %v405 = vpack.c.b16 %v396, %v395
      %v406 = vpack.c.b16 %v398, %v397
      %415 = vmatprep.subr.bf16.mxu0 0
      %416 = vmatpush1.bf16.msra.mxu0 %v399
      %417 = vmatprep.subr.bf16.mxu0 0
      %418 = vmatpush1.bf16.msra.mxu0 %v400
      %419 = vmatprep.subr.bf16.mxu0 0
      %420 = vmatpush1.bf16.msra.mxu0 %v401
      %421 = vmatprep.subr.bf16.mxu0 0
      %422 = vmatpush1.bf16.msra.mxu0 %v402
      %423 = vmatprep.subr.bf16.mxu0 0
      %424 = vmatpush1.bf16.msra.mxu0 %v403
      %425 = vmatprep.subr.bf16.mxu0 0
      %426 = vmatpush1.bf16.msra.mxu0 %v404
      %427 = vmatprep.subr.bf16.mxu0 0
      %428 = vmatpush1.bf16.msra.mxu0 %v405
      %429 = vmatprep.subr.bf16.mxu0 0
      %430 = vmatpush1.bf16.msra.mxu0 %v406
      %431 = vmatprep.subr.bf16.mxu0 0
      %432 = vmatpush1.bf16.msra.mxu0 0
      %433 = vmatprep.subr.bf16.mxu0 0
      %434 = vmatpush1.bf16.msra.mxu0 0
      %435 = vmatprep.subr.bf16.mxu0 0
      %436 = vmatpush1.bf16.msra.mxu0 0
      %437 = vmatprep.subr.bf16.mxu0 0
      %438 = vmatpush1.bf16.msra.mxu0 0
      %439 = vmatprep.subr.bf16.mxu0 0
      %440 = vmatpush1.bf16.msra.mxu0 0
      %441 = vmatprep.subr.bf16.mxu0 0
      %442 = vmatpush1.bf16.msra.mxu0 0
      %443 = vmatprep.subr.bf16.mxu0 0
      %444 = vmatpush1.bf16.msra.mxu0 0
      %445 = vmatprep.subr.bf16.mxu0 0
      %446 = vmatpush1.bf16.msra.mxu0 0
      %447 = vmatprep.mubr.bf16.mxu0 0
      %448 = vmatmul.mubr.bf16.gmra.mrb[0].mxu0 %v335
      %v449 = vpop.f32.mrb[0].mxu0
      %v450 = vadd.f32 0.0, %v449
      %v451 = vpop.f32.mrb[0].mxu0
      %v452 = vpop.f32.mrb[0].mxu0
      %v453 = vadd.f32 0.0, %v452
      %v454 = vpop.f32.mrb[0].mxu0
      %455 = vmatprep.mubr.bf16.mxu0 0
      %456 = vmatmul.mubr.bf16.gmra.mrb[0].mxu0 %v336
      %v457 = vpop.f32.mrb[0].mxu0
      %v458 = vadd.f32 0.0, %v457
      %v459 = vpop.f32.mrb[0].mxu0
      %v460 = vpop.f32.mrb[0].mxu0
      %v461 = vadd.f32 0.0, %v460
      %v462 = vpop.f32.mrb[0].mxu0
      %463 = vmatprep.mubr.bf16.mxu0 0
      %464 = vmatmul.mubr.bf16.gmra.mrb[0].mxu0 %v337
      %v465 = vpop.f32.mrb[0].mxu0
      %v466 = vadd.f32 0.0, %v465
      %v467 = vpop.f32.mrb[0].mxu0
      %v468 = vpop.f32.mrb[0].mxu0
      %v469 = vadd.f32 0.0, %v468
      %v470 = vpop.f32.mrb[0].mxu0
      %471 = vmatprep.mubr.bf16.mxu0 0
      %472 = vmatmul.mubr.bf16.gmra.mrb[0].mxu0 %v338
      %v473 = vpop.f32.mrb[0].mxu0
      %v474 = vadd.f32 0.0, %v473
      %v475 = vpop.f32.mrb[0].mxu0
      %v476 = vpop.f32.mrb[0].mxu0
      %v477 = vadd.f32 0.0, %v476
      %v478 = vpop.f32.mrb[0].mxu0
      %479 = vmatprep.mubr.bf16.mxu0 0
      %480 = vmatmul.mubr.bf16.gmra.mrb[0].mxu0 %v339
      %v481 = vpop.f32.mrb[0].mxu0
      %v482 = vadd.f32 0.0, %v481
      %v483 = vpop.f32.mrb[0].mxu0
      %v484 = vpop.f32.mrb[0].mxu0
      %v485 = vadd.f32 0.0, %v484
      %v486 = vpop.f32.mrb[0].mxu0
      %487 = vmatprep.mubr.bf16.mxu0 0
      %488 = vmatmul.mubr.bf16.gmra.mrb[0].mxu0 %v340
      %v489 = vpop.f32.mrb[0].mxu0
      %v490 = vadd.f32 0.0, %v489
      %v491 = vpop.f32.mrb[0].mxu0
      %v492 = vpop.f32.mrb[0].mxu0
      %v493 = vadd.f32 0.0, %v492
      %v494 = vpop.f32.mrb[0].mxu0
      %495 = vmatprep.mubr.bf16.mxu0 0
      %496 = vmatmul.mubr.bf16.gmra.mrb[0].mxu0 %v341
      %v497 = vpop.f32.mrb[0].mxu0
      %v498 = vadd.f32 0.0, %v497
      %v499 = vpop.f32.mrb[0].mxu0
      %v500 = vpop.f32.mrb[0].mxu0
      %v501 = vadd.f32 0.0, %v500
      %v502 = vpop.f32.mrb[0].mxu0
      %503 = vmatprep.mubr.bf16.mxu0 0
      %504 = vmatmul.mubr.bf16.gmra.mrb[0].mxu0 %v342
      %v505 = vpop.f32.mrb[0].mxu0
      %v506 = vadd.f32 0.0, %v505
      %v507 = vpop.f32.mrb[0].mxu0
      %v508 = vpop.f32.mrb[0].mxu0
      %v509 = vadd.f32 0.0, %v508
      %v510 = vpop.f32.mrb[0].mxu0
      %511 = vmatprep.mubr.bf16.mxu0 0
      %512 = vmatmul.mubr.bf16.gmra.mrb[0].mxu0 %v343
      %v513 = vpop.f32.mrb[0].mxu0
      %v514 = vadd.f32 0.0, %v513
      %v515 = vpop.f32.mrb[0].mxu0
      %v516 = vpop.f32.mrb[0].mxu0
      %v517 = vadd.f32 0.0, %v516
      %v518 = vpop.f32.mrb[0].mxu0
      %519 = vmatprep.mubr.bf16.mxu0 0
      %520 = vmatmul.mubr.bf16.gmra.mrb[0].mxu0 %v344
      %v521 = vpop.f32.mrb[0].mxu0
      %v522 = vadd.f32 0.0, %v521
      %v523 = vpop.f32.mrb[0].mxu0
      %v524 = vpop.f32.mrb[0].mxu0
      %v525 = vadd.f32 0.0, %v524
      %v526 = vpop.f32.mrb[0].mxu0
      %527 = vmatprep.mubr.bf16.mxu0 0
      %528 = vmatmul.mubr.bf16.gmra.mrb[0].mxu0 %v345
      %v529 = vpop.f32.mrb[0].mxu0
      %v530 = vadd.f32 0.0, %v529
      %v531 = vpop.f32.mrb[0].mxu0
      %v532 = vpop.f32.mrb[0].mxu0
      %v533 = vadd.f32 0.0, %v532
      %v534 = vpop.f32.mrb[0].mxu0
      %535 = vmatprep.mubr.bf16.mxu0 0
      %536 = vmatmul.mubr.bf16.gmra.mrb[0].mxu0 %v346
      %v537 = vpop.f32.mrb[0].mxu0
      %v538 = vadd.f32 0.0, %v537
      %v539 = vpop.f32.mrb[0].mxu0
      %v540 = vpop.f32.mrb[0].mxu0
      %v541 = vadd.f32 0.0, %v540
      %v542 = vpop.f32.mrb[0].mxu0
      %543 = vmatprep.mubr.bf16.mxu0 0
      %544 = vmatmul.mubr.bf16.gmra.mrb[0].mxu0 %v347
      %v545 = vpop.f32.mrb[0].mxu0
      %v546 = vadd.f32 0.0, %v545
      %v547 = vpop.f32.mrb[0].mxu0
      %v548 = vpop.f32.mrb[0].mxu0
      %v549 = vadd.f32 0.0, %v548
      %v550 = vpop.f32.mrb[0].mxu0
      %551 = vmatprep.mubr.bf16.mxu0 0
      %552 = vmatmul.mubr.bf16.gmra.mrb[0].mxu0 %v348
      %v553 = vpop.f32.mrb[0].mxu0
      %v554 = vadd.f32 0.0, %v553
      %v555 = vpop.f32.mrb[0].mxu0
      %v556 = vpop.f32.mrb[0].mxu0
      %v557 = vadd.f32 0.0, %v556
      %v558 = vpop.f32.mrb[0].mxu0
      %559 = vmatprep.mubr.bf16.mxu0 0
      %560 = vmatmul.mubr.bf16.gmra.mrb[0].mxu0 %v349
      %v561 = vpop.f32.mrb[0].mxu0
      %v562 = vadd.f32 0.0, %v561
      %v563 = vpop.f32.mrb[0].mxu0
      %v564 = vpop.f32.mrb[0].mxu0
      %v565 = vadd.f32 0.0, %v564
      %v566 = vpop.f32.mrb[0].mxu0
      %567 = vmatprep.mubr.bf16.mxu0 0
      %568 = vmatmul.mubr.bf16.gmra.mrb[0].mxu0 %v350
      %v569 = vpop.f32.mrb[0].mxu0
      %v570 = vadd.f32 0.0, %v569
      %v571 = vpop.f32.mrb[0].mxu0
      %v572 = vpop.f32.mrb[0].mxu0
      %v573 = vadd.f32 0.0, %v572
      %v574 = vpop.f32.mrb[0].mxu0
      %575 = vdwg.mxu0
      %576 = vst [vmem:[#allocation2] sm:$0xff] %v450
      %577 = vst [vmem:[#allocation2 + $0x8] sm:$0xff] %v453
      %578 = vst [vmem:[#allocation2 + $0x10] sm:$0xff] %v458
      %579 = vst [vmem:[#allocation2 + $0x18] sm:$0xff] %v461
      %580 = vst [vmem:[#allocation2 + $0x20] sm:$0xff] %v466
      %581 = vst [vmem:[#allocation2 + $0x28] sm:$0xff] %v469
      %582 = vst [vmem:[#allocation2 + $0x30] sm:$0xff] %v474
      %583 = vst [vmem:[#allocation2 + $0x38] sm:$0xff] %v477
      %584 = vst [vmem:[#allocation2 + $0x40] sm:$0xff] %v482
      %585 = vst [vmem:[#allocation2 + $0x48] sm:$0xff] %v485
      %586 = vst [vmem:[#allocation2 + $0x50] sm:$0xff] %v490
      %587 = vst [vmem:[#allocation2 + $0x58] sm:$0xff] %v493
      %588 = vst [vmem:[#allocation2 + $0x60] sm:$0xff] %v498
      %589 = vst [vmem:[#allocation2 + $0x68] sm:$0xff] %v501
      %590 = vst [vmem:[#allocation2 + $0x70] sm:$0xff] %v506
      %591 = vst [vmem:[#allocation2 + $0x78] sm:$0xff] %v509
      %592 = vst [vmem:[#allocation2 + $0x80] sm:$0xff] %v514
      %593 = vst [vmem:[#allocation2 + $0x88] sm:$0xff] %v517
      %594 = vst [vmem:[#allocation2 + $0x90] sm:$0xff] %v522
      %595 = vst [vmem:[#allocation2 + $0x98] sm:$0xff] %v525
      %596 = vst [vmem:[#allocation2 + $0xa0] sm:$0xff] %v530
      %597 = vst [vmem:[#allocation2 + $0xa8] sm:$0xff] %v533
      %598 = vst [vmem:[#allocation2 + $0xb0] sm:$0xff] %v538
      %599 = vst [vmem:[#allocation2 + $0xb8] sm:$0xff] %v541
      %600 = vst [vmem:[#allocation2 + $0xc0] sm:$0xff] %v546
      %601 = vst [vmem:[#allocation2 + $0xc8] sm:$0xff] %v549
      %602 = vst [vmem:[#allocation2 + $0xd0] sm:$0xff] %v554
      %603 = vst [vmem:[#allocation2 + $0xd8] sm:$0xff] %v557
      %604 = vst [vmem:[#allocation2 + $0xe0] sm:$0xff] %v562
      %605 = vst [vmem:[#allocation2 + $0xe8] sm:$0xff] %v565
      %606 = vst [vmem:[#allocation2 + $0xf0] sm:$0xff] %v570
      %607 = vst [vmem:[#allocation2 + $0xf8] sm:$0xff] %v573
      %v608 = vld [vmem:[#allocation2] sm:$0xff]
      %v609 = vld [vmem:[#allocation2 + $0x8] sm:$0xff]
      %v610 = vld [vmem:[#allocation2 + $0x10] sm:$0xff]
      %v611 = vld [vmem:[#allocation2 + $0x18] sm:$0xff]
      %v612 = vld [vmem:[#allocation2 + $0x20] sm:$0xff]
      %v613 = vld [vmem:[#allocation2 + $0x28] sm:$0xff]
      %v614 = vld [vmem:[#allocation2 + $0x30] sm:$0xff]
      %v615 = vld [vmem:[#allocation2 + $0x38] sm:$0xff]
      %v616 = vpack.c.bf16 %v609, %v608
      %v617 = vpack.c.bf16 %v611, %v610
      %v618 = vpack.c.bf16 %v613, %v612
      %v619 = vpack.c.bf16 %v615, %v614
      %v624 = vunpack.c.l.b16 %v616
      %v625 = vunpack.c.h.b16 %v616
      %v626 = vunpack.c.l.b16 %v617
      %v627 = vunpack.c.h.b16 %v617
      %v628 = vunpack.c.l.b16 %v618
      %v629 = vunpack.c.h.b16 %v618
      %v630 = vunpack.c.l.b16 %v619
      %v631 = vunpack.c.h.b16 %v619
      %v632 = vpack.c.b16 %v624, %v624
      %v633 = vpack.c.b16 %v625, %v625
      %v634 = vpack.c.b16 %v626, %v626
      %v635 = vpack.c.b16 %v627, %v627
      %v636 = vpack.c.b16 %v628, %v628
      %v637 = vpack.c.b16 %v629, %v629
      %v638 = vpack.c.b16 %v630, %v630
      %v639 = vpack.c.b16 %v631, %v631
      %648 = vst [vmem:[%s212] sm:$0xf] %v632
      %649 = vst [vmem:[%s212 + $0x4] sm:$0xf] %v633
      %650 = vst [vmem:[%s212 + $0x8] sm:$0xf] %v634
      %651 = vst [vmem:[%s212 + $0xc] sm:$0xf] %v635
      %652 = vst [vmem:[%s212 + $0x10] sm:$0xf] %v636
      %653 = vst [vmem:[%s212 + $0x14] sm:$0xf] %v637
      %654 = vst [vmem:[%s212 + $0x18] sm:$0xf] %v638
      %655 = vst [vmem:[%s212 + $0x1c] sm:$0xf] %v639
      %v656 = vadd.f32 %v608, %v609
      %v657 = vadd.f32 %v656, %v610
      %v658 = vadd.f32 %v657, %v611
      %v659 = vadd.f32 %v658, %v612
      %v660 = vadd.f32 %v659, %v613
      %v661 = vadd.f32 %v660, %v614
      %v662 = vadd.f32 %v661, %v615
      %v663 = vadd.f32 %v662, 0.0
      %v664 = vmul.f32 %v608, %v608
      %v665 = vmul.f32 %v609, %v609
      %v666 = vmul.f32 %v610, %v610
      %v667 = vmul.f32 %v611, %v611
      %v668 = vmul.f32 %v612, %v612
      %v669 = vmul.f32 %v613, %v613
      %v670 = vmul.f32 %v614, %v614
      %v671 = vmul.f32 %v615, %v615
      %v672 = vadd.f32 %v664, %v665
      %v673 = vadd.f32 %v672, %v666
      %v674 = vadd.f32 %v673, %v667
      %v675 = vadd.f32 %v674, %v668
      %v676 = vadd.f32 %v675, %v669
      %v677 = vadd.f32 %v676, %v670
      %v678 = vadd.f32 %v677, %v671
      %v679 = vadd.f32 %v678, 0.0
      %v680 = vld [vmem:[#allocation2 + $0x40] sm:$0xff]
      %v681 = vld [vmem:[#allocation2 + $0x48] sm:$0xff]
      %v682 = vld [vmem:[#allocation2 + $0x50] sm:$0xff]
      %v683 = vld [vmem:[#allocation2 + $0x58] sm:$0xff]
      %v684 = vld [vmem:[#allocation2 + $0x60] sm:$0xff]
      %v685 = vld [vmem:[#allocation2 + $0x68] sm:$0xff]
      %v686 = vld [vmem:[#allocation2 + $0x70] sm:$0xff]
      %v687 = vld [vmem:[#allocation2 + $0x78] sm:$0xff]
      %v688 = vpack.c.bf16 %v681, %v680
      %v689 = vpack.c.bf16 %v683, %v682
      %v690 = vpack.c.bf16 %v685, %v684
      %v691 = vpack.c.bf16 %v687, %v686
      %v696 = vunpack.c.l.b16 %v688
      %v697 = vunpack.c.h.b16 %v688
      %v698 = vunpack.c.l.b16 %v689
      %v699 = vunpack.c.h.b16 %v689
      %v700 = vunpack.c.l.b16 %v690
      %v701 = vunpack.c.h.b16 %v690
      %v702 = vunpack.c.l.b16 %v691
      %v703 = vunpack.c.h.b16 %v691
      %v704 = vpack.c.b16 %v696, %v696
      %v705 = vpack.c.b16 %v697, %v697
      %v706 = vpack.c.b16 %v698, %v698
      %v707 = vpack.c.b16 %v699, %v699
      %v708 = vpack.c.b16 %v700, %v700
      %v709 = vpack.c.b16 %v701, %v701
      %v710 = vpack.c.b16 %v702, %v702
      %v711 = vpack.c.b16 %v703, %v703
      %720 = vst [vmem:[%s212 + $0x20] sm:$0xf] %v704
      %721 = vst [vmem:[%s212 + $0x24] sm:$0xf] %v705
      %722 = vst [vmem:[%s212 + $0x28] sm:$0xf] %v706
      %723 = vst [vmem:[%s212 + $0x2c] sm:$0xf] %v707
      %724 = vst [vmem:[%s212 + $0x30] sm:$0xf] %v708
      %725 = vst [vmem:[%s212 + $0x34] sm:$0xf] %v709
      %726 = vst [vmem:[%s212 + $0x38] sm:$0xf] %v710
      %727 = vst [vmem:[%s212 + $0x3c] sm:$0xf] %v711
      %v728 = vadd.f32 %v680, %v681
      %v729 = vadd.f32 %v728, %v682
      %v730 = vadd.f32 %v729, %v683
      %v731 = vadd.f32 %v730, %v684
      %v732 = vadd.f32 %v731, %v685
      %v733 = vadd.f32 %v732, %v686
      %v734 = vadd.f32 %v733, %v687
      %v735 = vadd.f32 %v663, %v734
      %v736 = vmul.f32 %v680, %v680
      %v737 = vmul.f32 %v681, %v681
      %v738 = vmul.f32 %v682, %v682
      %v739 = vmul.f32 %v683, %v683
      %v740 = vmul.f32 %v684, %v684
      %v741 = vmul.f32 %v685, %v685
      %v742 = vmul.f32 %v686, %v686
      %v743 = vmul.f32 %v687, %v687
      %v744 = vadd.f32 %v736, %v737
      %v745 = vadd.f32 %v744, %v738
      %v746 = vadd.f32 %v745, %v739
      %v747 = vadd.f32 %v746, %v740
      %v748 = vadd.f32 %v747, %v741
      %v749 = vadd.f32 %v748, %v742
      %v750 = vadd.f32 %v749, %v743
      %v751 = vadd.f32 %v679, %v750
      %v752 = vld [vmem:[#allocation2 + $0x80] sm:$0xff]
      %v753 = vld [vmem:[#allocation2 + $0x88] sm:$0xff]
      %v754 = vld [vmem:[#allocation2 + $0x90] sm:$0xff]
      %v755 = vld [vmem:[#allocation2 + $0x98] sm:$0xff]
      %v756 = vld [vmem:[#allocation2 + $0xa0] sm:$0xff]
      %v757 = vld [vmem:[#allocation2 + $0xa8] sm:$0xff]
      %v758 = vld [vmem:[#allocation2 + $0xb0] sm:$0xff]
      %v759 = vld [vmem:[#allocation2 + $0xb8] sm:$0xff]
      %v760 = vpack.c.bf16 %v753, %v752
      %v761 = vpack.c.bf16 %v755, %v754
      %v762 = vpack.c.bf16 %v757, %v756
      %v763 = vpack.c.bf16 %v759, %v758
      %v768 = vunpack.c.l.b16 %v760
      %v769 = vunpack.c.h.b16 %v760
      %v770 = vunpack.c.l.b16 %v761
      %v771 = vunpack.c.h.b16 %v761
      %v772 = vunpack.c.l.b16 %v762
      %v773 = vunpack.c.h.b16 %v762
      %v774 = vunpack.c.l.b16 %v763
      %v775 = vunpack.c.h.b16 %v763
      %v776 = vpack.c.b16 %v768, %v768
      %v777 = vpack.c.b16 %v769, %v769
      %v778 = vpack.c.b16 %v770, %v770
      %v779 = vpack.c.b16 %v771, %v771
      %v780 = vpack.c.b16 %v772, %v772
      %v781 = vpack.c.b16 %v773, %v773
      %v782 = vpack.c.b16 %v774, %v774
      %v783 = vpack.c.b16 %v775, %v775
      %792 = vst [vmem:[%s212 + $0x40] sm:$0xf] %v776
      %793 = vst [vmem:[%s212 + $0x44] sm:$0xf] %v777
      %794 = vst [vmem:[%s212 + $0x48] sm:$0xf] %v778
      %795 = vst [vmem:[%s212 + $0x4c] sm:$0xf] %v779
      %796 = vst [vmem:[%s212 + $0x50] sm:$0xf] %v780
      %797 = vst [vmem:[%s212 + $0x54] sm:$0xf] %v781
      %798 = vst [vmem:[%s212 + $0x58] sm:$0xf] %v782
      %799 = vst [vmem:[%s212 + $0x5c] sm:$0xf] %v783
      %v800 = vadd.f32 %v752, %v753
      %v801 = vadd.f32 %v800, %v754
      %v802 = vadd.f32 %v801, %v755
      %v803 = vadd.f32 %v802, %v756
      %v804 = vadd.f32 %v803, %v757
      %v805 = vadd.f32 %v804, %v758
      %v806 = vadd.f32 %v805, %v759
      %v807 = vadd.f32 %v735, %v806
      %v808 = vmul.f32 %v752, %v752
      %v809 = vmul.f32 %v753, %v753
      %v810 = vmul.f32 %v754, %v754
      %v811 = vmul.f32 %v755, %v755
      %v812 = vmul.f32 %v756, %v756
      %v813 = vmul.f32 %v757, %v757
      %v814 = vmul.f32 %v758, %v758
      %v815 = vmul.f32 %v759, %v759
      %v816 = vadd.f32 %v808, %v809
      %v817 = vadd.f32 %v816, %v810
      %v818 = vadd.f32 %v817, %v811
      %v819 = vadd.f32 %v818, %v812
      %v820 = vadd.f32 %v819, %v813
      %v821 = vadd.f32 %v820, %v814
      %v822 = vadd.f32 %v821, %v815
      %v823 = vadd.f32 %v751, %v822
      %v824 = vld [vmem:[#allocation2 + $0xc0] sm:$0xff]
      %v825 = vld [vmem:[#allocation2 + $0xc8] sm:$0xff]
      %v826 = vld [vmem:[#allocation2 + $0xd0] sm:$0xff]
      %v827 = vld [vmem:[#allocation2 + $0xd8] sm:$0xff]
      %v828 = vld [vmem:[#allocation2 + $0xe0] sm:$0xff]
      %v829 = vld [vmem:[#allocation2 + $0xe8] sm:$0xff]
      %v830 = vld [vmem:[#allocation2 + $0xf0] sm:$0xff]
      %v831 = vld [vmem:[#allocation2 + $0xf8] sm:$0xff]
      %v832 = vpack.c.bf16 %v825, %v824
      %v833 = vpack.c.bf16 %v827, %v826
      %v834 = vpack.c.bf16 %v829, %v828
      %v835 = vpack.c.bf16 %v831, %v830
      %v840 = vunpack.c.l.b16 %v832
      %v841 = vunpack.c.h.b16 %v832
      %v842 = vunpack.c.l.b16 %v833
      %v843 = vunpack.c.h.b16 %v833
      %v844 = vunpack.c.l.b16 %v834
      %v845 = vunpack.c.h.b16 %v834
      %v846 = vunpack.c.l.b16 %v835
      %v847 = vunpack.c.h.b16 %v835
      %v848 = vpack.c.b16 %v840, %v840
      %v849 = vpack.c.b16 %v841, %v841
      %v850 = vpack.c.b16 %v842, %v842
      %v851 = vpack.c.b16 %v843, %v843
      %v852 = vpack.c.b16 %v844, %v844
      %v853 = vpack.c.b16 %v845, %v845
      %v854 = vpack.c.b16 %v846, %v846
      %v855 = vpack.c.b16 %v847, %v847
      %864 = vst [vmem:[%s212 + $0x60] sm:$0xf] %v848
      %865 = vst [vmem:[%s212 + $0x64] sm:$0xf] %v849
      %866 = vst [vmem:[%s212 + $0x68] sm:$0xf] %v850
      %867 = vst [vmem:[%s212 + $0x6c] sm:$0xf] %v851
      %868 = vst [vmem:[%s212 + $0x70] sm:$0xf] %v852
      %869 = vst [vmem:[%s212 + $0x74] sm:$0xf] %v853
      %870 = vst [vmem:[%s212 + $0x78] sm:$0xf] %v854
      %871 = vst [vmem:[%s212 + $0x7c] sm:$0xf] %v855
      %v872 = vadd.f32 %v824, %v825
      %v873 = vadd.f32 %v872, %v826
      %v874 = vadd.f32 %v873, %v827
      %v875 = vadd.f32 %v874, %v828
      %v876 = vadd.f32 %v875, %v829
      %v877 = vadd.f32 %v876, %v830
      %v878 = vadd.f32 %v877, %v831
      %v879 = vadd.f32 %v807, %v878
      %v880 = vmul.f32 %v824, %v824
      %v881 = vmul.f32 %v825, %v825
      %v882 = vmul.f32 %v826, %v826
      %v883 = vmul.f32 %v827, %v827
      %v884 = vmul.f32 %v828, %v828
      %v885 = vmul.f32 %v829, %v829
      %v886 = vmul.f32 %v830, %v830
      %v887 = vmul.f32 %v831, %v831
      %v888 = vadd.f32 %v880, %v881
      %v889 = vadd.f32 %v888, %v882
      %v890 = vadd.f32 %v889, %v883
      %v891 = vadd.f32 %v890, %v884
      %v892 = vadd.f32 %v891, %v885
      %v893 = vadd.f32 %v892, %v886
      %v894 = vadd.f32 %v893, %v887
      %v895 = vadd.f32 %v823, %v894
      %896 = vst [vmem:[%s217] sm:$0xff] %v879
      %897 = vst [vmem:[%s221] sm:$0xff] %v895
      %s898 = smul.u32 32, %s16
      %p899 = scmp.lt.s32.totalorder %s898, 63
      %s900 = scalar_select %p899, %s898, 63
      %s901 = smul.addr %s900, 4
      %s902 = scalar_lea.vmem %s2, %s901
      %p903 = scmp.lt.s32.totalorder %s16, 1
      %s904 = scalar_select %p903, %s16, 1
      %s905 = smul.addr %s904, 8
      %s906 = scalar_lea.vmem %s3, %s905
      %p907 = scmp.lt.s32.totalorder %s16, 1
      %s908 = scalar_select %p907, %s16, 1
      %s909 = smul.addr %s908, 8
      %s910 = scalar_lea.vmem %s4, %s909
      // Predicated region
      $region29: #{cnn_block_forward.2} parent=27 // pred_check
        %p911 = pneg %p81
      $region30: #{cnn_block_forward.2} parent=27 // pred_check_branch
        %913 = sbr.rel (%p911) target = $region32
      $region31: #{cnn_block_forward.2} parent=27 // pred_region
        %s914 = smul.u32 32, %s16
      $region32: #{cnn_block_forward.2} parent=27 // pred_fallthru
        _
      // Predicated region
      $region33: #{cnn_block_forward.2} parent=27 // pred_check
        %p915 = pneg %p107
      $region34: #{cnn_block_forward.2} parent=27 // pred_check_branch
        %917 = sbr.rel (%p915) target = $region36
      $region35: #{cnn_block_forward.2} parent=27 // pred_region
        _
      $region36: #{cnn_block_forward.2} parent=27 // pred_fallthru
        _
      // Predicated region
      $region37: #{cnn_block_forward.2} parent=27 // pred_check
        %p918 = pneg %p133
      $region38: #{cnn_block_forward.2} parent=27 // pred_check_branch
        %920 = sbr.rel (%p918) target = $region40
      $region39: #{cnn_block_forward.2} parent=27 // pred_region
        _
      $region40: #{cnn_block_forward.2} parent=27 // pred_fallthru
        _
    $region28: #{cnn_block_forward.2} parent=5 // pred_fallthru
      _
    %p921 = scmp.le.s32.totalorder 2, %s11
    // Predicated region
    $region41: #{cnn_block_forward.2} parent=5 // pred_check
      %p922 = pneg %p921
    $region42: #{cnn_block_forward.2} parent=5 // pred_check_branch
      %924 = sbr.rel (%p922) target = $region44
    $region43: #{cnn_block_forward.2} parent=5 // pred_region
      %s925 = ssub.s32 %s11, 2
      // Predicated region
      $region45: #{cnn_block_forward.2} parent=43 // pred_check
        %p926 = pneg %p87
      $region46: #{cnn_block_forward.2} parent=43 // pred_check_branch
        %928 = sbr.rel (%p926) target = $region48
      $region47: #{cnn_block_forward.2} parent=43 // pred_region
        %s929 = smul.u32 32, %s17
        %p930 = scmp.lt.s32.totalorder %s929, 63
        %s931 = scalar_select %p930, %s929, 63
        %s932 = smul.addr %s931, 4
        %s933 = scalar_lea.vmem %s2, %s932
      $region48: #{cnn_block_forward.2} parent=43 // pred_fallthru
        _
      // Predicated region
      $region49: #{cnn_block_forward.2} parent=43 // pred_check
        %p934 = pneg %p113
      $region50: #{cnn_block_forward.2} parent=43 // pred_check_branch
        %936 = sbr.rel (%p934) target = $region52
      $region51: #{cnn_block_forward.2} parent=43 // pred_region
        %p937 = scmp.lt.s32.totalorder %s17, 1
        %s938 = scalar_select %p937, %s17, 1
        %s939 = smul.addr %s938, 8
        %s940 = scalar_lea.vmem %s3, %s939
      $region52: #{cnn_block_forward.2} parent=43 // pred_fallthru
        _
      // Predicated region
      $region53: #{cnn_block_forward.2} parent=43 // pred_check
        %p941 = pneg %p139
      $region54: #{cnn_block_forward.2} parent=43 // pred_check_branch
        %943 = sbr.rel (%p941) target = $region56
      $region55: #{cnn_block_forward.2} parent=43 // pred_region
        %p944 = scmp.lt.s32.totalorder %s17, 1
        %s945 = scalar_select %p944, %s17, 1
        %s946 = smul.addr %s945, 8
        %s947 = scalar_lea.vmem %s4, %s946
      $region56: #{cnn_block_forward.2} parent=43 // pred_fallthru
        _
    $region44: #{cnn_block_forward.2} parent=5 // pred_fallthru
      _
  $region6: #{cnn_block_forward.2} parent=0 // loop_footer
    %s15 = sadd.s32 1, %s11
  $region7: #{cnn_block_forward.2} parent=0 // loop_footer_branch
    %10 = sbr.rel target = $region3
  $region8: #{cnn_block_forward.2} parent=0 // loop_exit
    _

</llo_original>
